<compile_context>
chip_gen: v7x
topology: tpu7x:2x2x1
jax: 0.10.0
libtpu: 0.0.40
codegen_flags: <defaults>
</compile_context>

<pallas_src>
import dataclasses
import functools
from typing import Any, Tuple

import jax
import jax.numpy as jnp
from jax.experimental import pallas as pl
from jax.experimental.pallas import tpu as pltpu

LEAKY_SLOPE = 0.01   # torch.nn.LeakyReLU default negative_slope
LANE = 128
SUBLANE = 8
MAX_TB = 512         # batch-tile upper bound (multiple of the 256-row v6e/v7x MXU)


def _round_up(x, m):
    return (x + m - 1) // m * m


def _vmem_capacity_bytes():
    """Physical VMEM per core; conservative fallback if the query is unavailable."""
    try:
        return int(pltpu.get_tpu_info().vmem_capacity_bytes)
    except Exception:
        return 64 * 1024 * 1024   # v7x per-TC size -> safe lower bound on every generation


# ---------------------------------------------------------------------------
# Kernel: the whole Rho MLP fused, applied to one batch tile.
#   refs = (x_ref, w0, b0, w1, b1, ..., w_{L-1}, b_{L-1}, o_ref)
#   x tile : (tb, D0_pad)       caller dtype (cast to the weight dtype in-kernel)
#   w_l    : (Dl_pad, Dl1_pad)  compute dtype (bf16 by default)
#   b_l    : (1, Dl1_pad)       f32
#   o      : (tb, out_dim)      TRUE (unpadded) output width
# ---------------------------------------------------------------------------
def _rho_mlp_kernel(*refs, n_layers):
    x_ref = refs[0]
    o_ref = refs[1 + 2 * n_layers]
    h = x_ref[...]
    for l in range(n_layers):
        w_ref = refs[1 + 2 * l]
        b_ref = refs[2 + 2 * l]
        y = jnp.dot(h.astype(w_ref.dtype), w_ref[...],
                    preferred_element_type=jnp.float32)        # MXU, f32 accumulate
        y = y + b_ref[...].astype(jnp.float32)                 # f32 epilogue (VPU)
        if l < n_layers - 1:                                   # final Linear of Rho is bare
            y = jnp.where(y >= 0, y, LEAKY_SLOPE * y)          # LeakyReLU
        h = y
    # Store only the true output columns (masked store; avoids a 128x write-back
    # and the post-kernel column slice when out_dim < 128).
    o_ref[...] = h[:, : o_ref.shape[-1]].astype(o_ref.dtype)


@dataclasses.dataclass(frozen=True)
class RhoPrepared:
    weights: Tuple[Any, ...]     # padded (Din_pad, Dout_pad), compute dtype
    biases: Tuple[Any, ...]      # padded (1, Dout_pad), f32
    dims: Tuple[int, ...]        # true widths: (d_in, hidden..., out_dim)
    dims_pad: Tuple[int, ...]    # lane-padded widths
    compute_dtype: Any
    weight_bytes: int            # total padded weight+bias bytes (one copy)
    flops_per_row: int           # padded MAC flops per batch row


def rho_prepare_params(params, compute_dtype=jnp.bfloat16):
    """One-time pad + cast of Rho parameters (hoisted out of the per-call forward path).

    params: [(W_t, b), ...] with W_t of shape (in, out) such that y = x @ W_t + b
    (i.e. torch's W pre-transposed).  Zero padding is exactly inert through
    Linear (+LeakyReLU): padded weight rows/cols and bias lanes are zero.
    """
    cdt = jnp.dtype(compute_dtype)
    dims = [params[0][0].shape[0]] + [w.shape[1] for (w, _) in params]
    dims_pad = [_round_up(d, LANE) for d in dims]
    weights, biases = [], []
    weight_bytes = 0
    flops_per_row = 0
    for l, (w, b) in enumerate(params):
        di, do = w.shape
        dpi, dpo = dims_pad[l], dims_pad[l + 1]
        w_p = jnp.zeros((dpi, dpo), cdt).at[:di, :do].set(w.astype(cdt))
        b_p = jnp.zeros((1, dpo), jnp.float32).at[0, :do].set(b.astype(jnp.float32))
        weights.append(w_p)
        biases.append(b_p)
        weight_bytes += w_p.size * w_p.dtype.itemsize + b_p.size * 4
        flops_per_row += 2 * dpi * dpo
    return RhoPrepared(tuple(weights), tuple(biases), tuple(dims), tuple(dims_pad),
                       cdt, weight_bytes, flops_per_row)


def _choose_batch_tiling(B, d0_pad, max_dim_pad, out_dim, x_itemsize, weight_bytes):
    """Balanced batch tiles: large enough to amortize per-grid-step overhead and fill
    MXU rows, small enough for VMEM, and >= 2 grid steps so the 'parallel' axis can
    span both v7x TensorCores (harmless extra step on 1-TC v5e/v6e)."""
    capacity = _vmem_capacity_bytes()
    # Per-row VMEM cost: double-buffered x tile + output tile + f32 intermediates slack.
    bytes_per_row = 2 * d0_pad * x_itemsize + 2 * out_dim * 4 + 4 * max_dim_pad * 4
    budget = int(0.6 * capacity) - 2 * weight_bytes
    tb_cap = max(SUBLANE, (max(budget, 0) // max(bytes_per_row, 1)) // SUBLANE * SUBLANE)
    max_tb = max(SUBLANE, min(MAX_TB, tb_cap))
    min_grid = 2 if B > SUBLANE else 1
    grid = max(pl.cdiv(B, max_tb), min_grid)
    tb = _round_up(pl.cdiv(B, grid), SUBLANE)
    return grid, tb, capacity


def rho_forward(prepared, x, *, weight_buffer_count=1, out_dtype=None):
    """Rho.forward (eval mode) as one fused Pallas kernel.

    x: (B, d_in) activations in any float dtype; the cast to the compute dtype happens
    in-kernel, so passing bf16 activations halves the input DMA with no wrapper pass.
    weight_buffer_count=1 single-buffers the VMEM-resident weights; None uses the default.
    """
    # TODO(synk): training-mode Dropout(p) between hidden blocks is omitted (eval semantics).
    B, d_in = x.shape
    dims, dims_pad = prepared.dims, prepared.dims_pad
    assert d_in == dims[0], "input feature dim mismatch"
    n_layers = len(prepared.weights)
    out_dim = dims[-1]
    out_dtype = jnp.dtype(out_dtype) if out_dtype is not None else x.dtype

    grid, tb, vmem_capacity = _choose_batch_tiling(
        B, dims_pad[0], max(dims_pad), out_dim, x.dtype.itemsize, prepared.weight_bytes)
    B_pad = grid * tb

    # Zero-copy fast path when x is already lane-aligned and tile-divisible; otherwise
    # a single pad (zero rows/cols are inert and padded rows are sliced away below).
    if dims_pad[0] == d_in and B_pad == B:
        x_in = x
    else:
        x_in = jnp.zeros((B_pad, dims_pad[0]), x.dtype).at[:B, :d_in].set(x)

    # Constant-index (VMEM-resident) weights/biases; single-buffered when requested.
    if weight_buffer_count is None:
        def _resident_spec(shape):
            return pl.BlockSpec(shape, lambda i: (0, 0))
    else:
        def _resident_spec(shape):
            return pl.BlockSpec(shape, lambda i: (0, 0),
                                pipeline_mode=pl.Buffered(weight_buffer_count))

    flat_inputs = [x_in]
    in_specs = [pl.BlockSpec((tb, dims_pad[0]), lambda i: (i, 0))]
    for w_p, b_p in zip(prepared.weights, prepared.biases):
        flat_inputs += [w_p, b_p]
        in_specs += [_resident_spec(w_p.shape), _resident_spec(b_p.shape)]

    out_struct = jax.ShapeDtypeStruct((B_pad, out_dim), out_dtype)

    wb = 1 if weight_buffer_count == 1 else 2
    vmem_need = (wb * prepared.weight_bytes
                 + 2 * tb * dims_pad[0] * x.dtype.itemsize
                 + 2 * tb * out_dim * jnp.dtype(out_dtype).itemsize
                 + 4 * tb * max(dims_pad) * 4)
    vmem_limit = int(min(0.9 * vmem_capacity, max(32 * 1024 * 1024, 1.5 * vmem_need)))

    flops = prepared.flops_per_row * B_pad
    bytes_accessed = (x_in.size * x_in.dtype.itemsize + prepared.weight_bytes
                      + B_pad * out_dim * jnp.dtype(out_dtype).itemsize)

    out = pl.pallas_call(
        functools.partial(_rho_mlp_kernel, n_layers=n_layers),
        out_shape=out_struct,
        grid_spec=pltpu.PrefetchScalarGridSpec(
            num_scalar_prefetch=0,
            grid=(grid,),
            in_specs=in_specs,
            out_specs=pl.BlockSpec((tb, out_dim), lambda i: (i, 0)),
        ),
        compiler_params=pltpu.CompilerParams(
            dimension_semantics=("parallel",),
            vmem_limit_bytes=vmem_limit),
        cost_estimate=pl.CostEstimate(
            flops=flops, transcendentals=0, bytes_accessed=bytes_accessed),
    )(*flat_inputs)

    return out if B_pad == B else out[:B]


def rho_init_params(key, phi_hidden_size, hidden_init=100, n_layer=1, output_size=1):
    """Deterministic torch.nn.Linear-style init following the Rho layer-size schedule."""
    layer_size = [phi_hidden_size, hidden_init]
    h = hidden_init
    for _ in range(n_layer - 1):
        h = h // 2
        layer_size.append(h)
    layer_size.append(output_size)        # final plain Linear
    params = []
    for i in range(len(layer_size) - 1):
        fan_in, fan_out = layer_size[i], layer_size[i + 1]
        key, kw, kb = jax.random.split(key, 3)
        bound = 1.0 / (fan_in ** 0.5)
        # stored pre-transposed as (in, out): y = x @ W_t + b  ==  torch x @ W.T + b
        w_t = jax.random.uniform(kw, (fan_in, fan_out), jnp.float32, -bound, bound)
        b = jax.random.uniform(kb, (fan_out,), jnp.float32, -bound, bound)
        params.append((w_t, b))
    return params


def rho_reference(params, x):
    """Pure-JAX reference: hidden Linear+LeakyReLU blocks, bare final Linear."""
    h = x
    n = len(params)
    for l, (w, b) in enumerate(params):
        y = jnp.dot(h, w, precision=jax.lax.Precision.HIGHEST) + b
        if l < n - 1:
            y = jnp.where(y >= 0, y, LEAKY_SLOPE * y)
        h = y
    return h


if __name__ == "__main__":
    key = jax.random.PRNGKey(0)
    batch, phi_hidden, hidden_init, n_layer, output_size = 16, 32, 64, 2, 1
    # layer widths: 32 -> 64 (LeakyReLU) -> 32 (LeakyReLU) -> 1 (no activation)

    kx, kp = jax.random.split(key)
    x = jax.random.normal(kx, (batch, phi_hidden), jnp.float32)
    params = rho_init_params(kp, phi_hidden, hidden_init, n_layer, output_size)
    ref = rho_reference(params, x)

    # Default bf16 MXU path; padded/cast params prepared once, outside the forward.
    prepared_bf16 = rho_prepare_params(params)   # compute_dtype defaults to bf16
    out_bf16 = None
    used_wbc = None
    last_err = None
    for wbc in (1, None):   # single-buffered resident weights; fall back if unsupported
        try:
            fwd = jax.jit(functools.partial(rho_forward, prepared_bf16,
                                            weight_buffer_count=wbc))
            out_bf16 = jax.block_until_ready(fwd(x))
            used_wbc = wbc
            break
        except Exception as e:    # pl.Buffered(1) rejected by this JAX/Mosaic build
            last_err = e
    if out_bf16 is None:
        raise last_err
    assert out_bf16.shape == ref.shape == (batch, output_size)
    assert jnp.allclose(out_bf16, ref, atol=5e-2, rtol=5e-2), "bf16 path mismatch vs reference"

    # f32 compute path with tight tolerance (guards the cast points).
    prepared_f32 = rho_prepare_params(params, compute_dtype=jnp.float32)
    fwd_f32 = jax.jit(functools.partial(rho_forward, prepared_f32,
                                        weight_buffer_count=used_wbc))
    out_f32 = jax.block_until_ready(fwd_f32(x))
    assert out_f32.shape == (batch, output_size)
    assert jnp.allclose(out_f32, ref, atol=1e-4, rtol=1e-4), "f32 path mismatch vs reference"

    print("KERNEL_OK")
</pallas_src>

<mosaic_0001>
module attributes {stable_mosaic.version = 11 : i64} {
  func.func @_rho_mlp_kernel(%arg0: i32, %arg1: memref<8x128xf32, #tpu.memory_space<vmem>>, %arg2: memref<128x128xbf16, #tpu.memory_space<vmem>>, %arg3: memref<1x128xf32, #tpu.memory_space<vmem>>, %arg4: memref<128x128xbf16, #tpu.memory_space<vmem>>, %arg5: memref<1x128xf32, #tpu.memory_space<vmem>>, %arg6: memref<128x128xbf16, #tpu.memory_space<vmem>>, %arg7: memref<1x128xf32, #tpu.memory_space<vmem>>, %arg8: memref<8x1xf32, #tpu.memory_space<vmem>>) attributes {dimension_semantics = [#tpu.dimension_semantics<parallel>], iteration_bounds = array<i64: 2>, scalar_prefetch = 0 : i64, scratch_operands = 0 : i64, tpu.core_type = #tpu.core_type<tc>, window_params = [{transform_indices = @transform_0, window_bounds = array<i64: 8, 128>}, {pipeline_mode = #tpu.pipeline_mode<synchronous>, transform_indices = @transform_1, window_bounds = array<i64: 128, 128>}, {pipeline_mode = #tpu.pipeline_mode<synchronous>, transform_indices = @transform_2, window_bounds = array<i64: 1, 128>}, {pipeline_mode = #tpu.pipeline_mode<synchronous>, transform_indices = @transform_3, window_bounds = array<i64: 128, 128>}, {pipeline_mode = #tpu.pipeline_mode<synchronous>, transform_indices = @transform_4, window_bounds = array<i64: 1, 128>}, {pipeline_mode = #tpu.pipeline_mode<synchronous>, transform_indices = @transform_5, window_bounds = array<i64: 128, 128>}, {pipeline_mode = #tpu.pipeline_mode<synchronous>, transform_indices = @transform_6, window_bounds = array<i64: 1, 128>}, {transform_indices = @transform_7, window_bounds = array<i64: 8, 1>}]} {
    %c0 = arith.constant 0 : index
    %c0_0 = arith.constant 0 : index
    %0 = vector.load %arg1[%c0, %c0_0] : memref<8x128xf32, #tpu.memory_space<vmem>>, vector<8x128xf32>
    %1 = arith.truncf %0 : vector<8x128xf32> to vector<8x128xbf16>
    %c0_1 = arith.constant 0 : index
    %c0_2 = arith.constant 0 : index
    %2 = vector.load %arg2[%c0_1, %c0_2] : memref<128x128xbf16, #tpu.memory_space<vmem>>, vector<128x128xbf16>
    %cst = arith.constant dense<0.000000e+00> : vector<8x128xf32>
    %3 = tpu.matmul %1, %2, %cst {dimension_numbers = #tpu.dot_dimension_numbers<[1], [0], [0], [1], [0, 0, 1, 1], [], []>} : vector<8x128xbf16>, vector<128x128xbf16>, vector<8x128xf32> -> vector<8x128xf32>
    %c0_3 = arith.constant 0 : index
    %c0_4 = arith.constant 0 : index
    %4 = vector.load %arg3[%c0_3, %c0_4] : memref<1x128xf32, #tpu.memory_space<vmem>>, vector<1x128xf32>
    %5 = vector.broadcast %4 : vector<1x128xf32> to vector<8x128xf32>
    %6 = arith.addf %3, %5 : vector<8x128xf32>
    %cst_5 = arith.constant 0.000000e+00 : f32
    %7 = vector.broadcast %cst_5 : f32 to vector<8x128xf32>
    %8 = arith.cmpf oge, %6, %7 : vector<8x128xf32>
    %cst_6 = arith.constant 0.00999999977 : f32
    %9 = vector.broadcast %cst_6 : f32 to vector<8x128xf32>
    %10 = arith.mulf %9, %6 : vector<8x128xf32>
    %11 = arith.select %8, %6, %10 : vector<8x128xi1>, vector<8x128xf32>
    %12 = arith.truncf %11 : vector<8x128xf32> to vector<8x128xbf16>
    %c0_7 = arith.constant 0 : index
    %c0_8 = arith.constant 0 : index
    %13 = vector.load %arg4[%c0_7, %c0_8] : memref<128x128xbf16, #tpu.memory_space<vmem>>, vector<128x128xbf16>
    %cst_9 = arith.constant dense<0.000000e+00> : vector<8x128xf32>
    %14 = tpu.matmul %12, %13, %cst_9 {dimension_numbers = #tpu.dot_dimension_numbers<[1], [0], [0], [1], [0, 0, 1, 1], [], []>} : vector<8x128xbf16>, vector<128x128xbf16>, vector<8x128xf32> -> vector<8x128xf32>
    %c0_10 = arith.constant 0 : index
    %c0_11 = arith.constant 0 : index
    %15 = vector.load %arg5[%c0_10, %c0_11] : memref<1x128xf32, #tpu.memory_space<vmem>>, vector<1x128xf32>
    %16 = vector.broadcast %15 : vector<1x128xf32> to vector<8x128xf32>
    %17 = arith.addf %14, %16 : vector<8x128xf32>
    %cst_12 = arith.constant 0.000000e+00 : f32
    %18 = vector.broadcast %cst_12 : f32 to vector<8x128xf32>
    %19 = arith.cmpf oge, %17, %18 : vector<8x128xf32>
    %cst_13 = arith.constant 0.00999999977 : f32
    %20 = vector.broadcast %cst_13 : f32 to vector<8x128xf32>
    %21 = arith.mulf %20, %17 : vector<8x128xf32>
    %22 = arith.select %19, %17, %21 : vector<8x128xi1>, vector<8x128xf32>
    %23 = arith.truncf %22 : vector<8x128xf32> to vector<8x128xbf16>
    %c0_14 = arith.constant 0 : index
    %c0_15 = arith.constant 0 : index
    %24 = vector.load %arg6[%c0_14, %c0_15] : memref<128x128xbf16, #tpu.memory_space<vmem>>, vector<128x128xbf16>
    %cst_16 = arith.constant dense<0.000000e+00> : vector<8x128xf32>
    %25 = tpu.matmul %23, %24, %cst_16 {dimension_numbers = #tpu.dot_dimension_numbers<[1], [0], [0], [1], [0, 0, 1, 1], [], []>} : vector<8x128xbf16>, vector<128x128xbf16>, vector<8x128xf32> -> vector<8x128xf32>
    %c0_17 = arith.constant 0 : index
    %c0_18 = arith.constant 0 : index
    %26 = vector.load %arg7[%c0_17, %c0_18] : memref<1x128xf32, #tpu.memory_space<vmem>>, vector<1x128xf32>
    %27 = vector.broadcast %26 : vector<1x128xf32> to vector<8x128xf32>
    %28 = arith.addf %25, %27 : vector<8x128xf32>
    %29 = vector.extract_strided_slice %28 {offsets = [0, 0], sizes = [8, 1], strides = [1, 1]} : vector<8x128xf32> to vector<8x1xf32>
    %c0_19 = arith.constant 0 : index
    %c0_20 = arith.constant 0 : index
    %30 = vector.load %arg8[%c0_19, %c0_20] : memref<8x1xf32, #tpu.memory_space<vmem>>, vector<8x1xf32>
    tpu.vector_store %arg8[%c0_19, %c0_20], %29 {strides = array<i32>} : memref<8x1xf32, #tpu.memory_space<vmem>>, vector<8x1xf32>,
    return
  }
  func.func @transform_0(%arg0: i32) -> (i32, i32) {
    %c0_i32 = arith.constant 0 : i32
    %c0_i32_0 = arith.constant 0 : i32
    return %arg0, %c0_i32 : i32, i32
  }
  func.func @transform_1(%arg0: i32) -> (i32, i32) {
    %c0_i32 = arith.constant 0 : i32
    %c0_i32_0 = arith.constant 0 : i32
    %c0_i32_1 = arith.constant 0 : i32
    return %c0_i32, %c0_i32_0 : i32, i32
  }
  func.func @transform_2(%arg0: i32) -> (i32, i32) {
    %c0_i32 = arith.constant 0 : i32
    %c0_i32_0 = arith.constant 0 : i32
    %c0_i32_1 = arith.constant 0 : i32
    return %c0_i32, %c0_i32_0 : i32, i32
  }
  func.func @transform_3(%arg0: i32) -> (i32, i32) {
    %c0_i32 = arith.constant 0 : i32
    %c0_i32_0 = arith.constant 0 : i32
    %c0_i32_1 = arith.constant 0 : i32
    return %c0_i32, %c0_i32_0 : i32, i32
  }
  func.func @transform_4(%arg0: i32) -> (i32, i32) {
    %c0_i32 = arith.constant 0 : i32
    %c0_i32_0 = arith.constant 0 : i32
    %c0_i32_1 = arith.constant 0 : i32
    return %c0_i32, %c0_i32_0 : i32, i32
  }
  func.func @transform_5(%arg0: i32) -> (i32, i32) {
    %c0_i32 = arith.constant 0 : i32
    %c0_i32_0 = arith.constant 0 : i32
    %c0_i32_1 = arith.constant 0 : i32
    return %c0_i32, %c0_i32_0 : i32, i32
  }
  func.func @transform_6(%arg0: i32) -> (i32, i32) {
    %c0_i32 = arith.constant 0 : i32
    %c0_i32_0 = arith.constant 0 : i32
    %c0_i32_1 = arith.constant 0 : i32
    return %c0_i32, %c0_i32_0 : i32, i32
  }
  func.func @transform_7(%arg0: i32) -> (i32, i32) {
    %c0_i32 = arith.constant 0 : i32
    %c0_i32_0 = arith.constant 0 : i32
    return %arg0, %c0_i32 : i32, i32
  }
}

module attributes {stable_mosaic.version = 11 : i64} {
  func.func @_rho_mlp_kernel(%arg0: i32, %arg1: memref<8x128xf32, #tpu.memory_space<vmem>>, %arg2: memref<128x128xbf16, #tpu.memory_space<vmem>>, %arg3: memref<1x128xf32, #tpu.memory_space<vmem>>, %arg4: memref<128x128xbf16, #tpu.memory_space<vmem>>, %arg5: memref<1x128xf32, #tpu.memory_space<vmem>>, %arg6: memref<128x128xbf16, #tpu.memory_space<vmem>>, %arg7: memref<1x128xf32, #tpu.memory_space<vmem>>, %arg8: memref<8x1xf32, #tpu.memory_space<vmem>>) attributes {dimension_semantics = [#tpu.dimension_semantics<parallel>], iteration_bounds = array<i64: 2>, scalar_prefetch = 0 : i64, scratch_operands = 0 : i64, tpu.core_type = #tpu.core_type<tc>, window_params = [{transform_indices = @transform_0, window_bounds = array<i64: 8, 128>}, {pipeline_mode = #tpu.pipeline_mode<synchronous>, transform_indices = @transform_1, window_bounds = array<i64: 128, 128>}, {pipeline_mode = #tpu.pipeline_mode<synchronous>, transform_indices = @transform_2, window_bounds = array<i64: 1, 128>}, {pipeline_mode = #tpu.pipeline_mode<synchronous>, transform_indices = @transform_3, window_bounds = array<i64: 128, 128>}, {pipeline_mode = #tpu.pipeline_mode<synchronous>, transform_indices = @transform_4, window_bounds = array<i64: 1, 128>}, {pipeline_mode = #tpu.pipeline_mode<synchronous>, transform_indices = @transform_5, window_bounds = array<i64: 128, 128>}, {pipeline_mode = #tpu.pipeline_mode<synchronous>, transform_indices = @transform_6, window_bounds = array<i64: 1, 128>}, {transform_indices = @transform_7, window_bounds = array<i64: 8, 1>}]} {
    %c0 = arith.constant 0 : index
    %c0_0 = arith.constant 0 : index
    %0 = vector.load %arg1[%c0, %c0_0] : memref<8x128xf32, #tpu.memory_space<vmem>>, vector<8x128xf32>
    %1 = arith.truncf %0 : vector<8x128xf32> to vector<8x128xbf16>
    %c0_1 = arith.constant 0 : index
    %c0_2 = arith.constant 0 : index
    %2 = vector.load %arg2[%c0_1, %c0_2] : memref<128x128xbf16, #tpu.memory_space<vmem>>, vector<128x128xbf16>
    %cst = arith.constant dense<0.000000e+00> : vector<8x128xf32>
    %3 = tpu.matmul %1, %2, %cst {dimension_numbers = #tpu.dot_dimension_numbers<[1], [0], [0], [1], [0, 0, 1, 1], [], []>} : vector<8x128xbf16>, vector<128x128xbf16>, vector<8x128xf32> -> vector<8x128xf32>
    %c0_3 = arith.constant 0 : index
    %c0_4 = arith.constant 0 : index
    %4 = vector.load %arg3[%c0_3, %c0_4] : memref<1x128xf32, #tpu.memory_space<vmem>>, vector<1x128xf32>
    %5 = vector.broadcast %4 : vector<1x128xf32> to vector<8x128xf32>
    %6 = arith.addf %3, %5 : vector<8x128xf32>
    %cst_5 = arith.constant 0.000000e+00 : f32
    %7 = vector.broadcast %cst_5 : f32 to vector<8x128xf32>
    %8 = arith.cmpf oge, %6, %7 : vector<8x128xf32>
    %cst_6 = arith.constant 0.00999999977 : f32
    %9 = vector.broadcast %cst_6 : f32 to vector<8x128xf32>
    %10 = arith.mulf %9, %6 : vector<8x128xf32>
    %11 = arith.select %8, %6, %10 : vector<8x128xi1>, vector<8x128xf32>
    %12 = arith.truncf %11 : vector<8x128xf32> to vector<8x128xbf16>
    %c0_7 = arith.constant 0 : index
    %c0_8 = arith.constant 0 : index
    %13 = vector.load %arg4[%c0_7, %c0_8] : memref<128x128xbf16, #tpu.memory_space<vmem>>, vector<128x128xbf16>
    %cst_9 = arith.constant dense<0.000000e+00> : vector<8x128xf32>
    %14 = tpu.matmul %12, %13, %cst_9 {dimension_numbers = #tpu.dot_dimension_numbers<[1], [0], [0], [1], [0, 0, 1, 1], [], []>} : vector<8x128xbf16>, vector<128x128xbf16>, vector<8x128xf32> -> vector<8x128xf32>
    %c0_10 = arith.constant 0 : index
    %c0_11 = arith.constant 0 : index
    %15 = vector.load %arg5[%c0_10, %c0_11] : memref<1x128xf32, #tpu.memory_space<vmem>>, vector<1x128xf32>
    %16 = vector.broadcast %15 : vector<1x128xf32> to vector<8x128xf32>
    %17 = arith.addf %14, %16 : vector<8x128xf32>
    %cst_12 = arith.constant 0.000000e+00 : f32
    %18 = vector.broadcast %cst_12 : f32 to vector<8x128xf32>
    %19 = arith.cmpf oge, %17, %18 : vector<8x128xf32>
    %cst_13 = arith.constant 0.00999999977 : f32
    %20 = vector.broadcast %cst_13 : f32 to vector<8x128xf32>
    %21 = arith.mulf %20, %17 : vector<8x128xf32>
    %22 = arith.select %19, %17, %21 : vector<8x128xi1>, vector<8x128xf32>
    %23 = arith.truncf %22 : vector<8x128xf32> to vector<8x128xbf16>
    %c0_14 = arith.constant 0 : index
    %c0_15 = arith.constant 0 : index
    %24 = vector.load %arg6[%c0_14, %c0_15] : memref<128x128xbf16, #tpu.memory_space<vmem>>, vector<128x128xbf16>
    %cst_16 = arith.constant dense<0.000000e+00> : vector<8x128xf32>
    %25 = tpu.matmul %23, %24, %cst_16 {dimension_numbers = #tpu.dot_dimension_numbers<[1], [0], [0], [1], [0, 0, 1, 1], [], []>} : vector<8x128xbf16>, vector<128x128xbf16>, vector<8x128xf32> -> vector<8x128xf32>
    %c0_17 = arith.constant 0 : index
    %c0_18 = arith.constant 0 : index
    %26 = vector.load %arg7[%c0_17, %c0_18] : memref<1x128xf32, #tpu.memory_space<vmem>>, vector<1x128xf32>
    %27 = vector.broadcast %26 : vector<1x128xf32> to vector<8x128xf32>
    %28 = arith.addf %25, %27 : vector<8x128xf32>
    %29 = vector.extract_strided_slice %28 {offsets = [0, 0], sizes = [8, 1], strides = [1, 1]} : vector<8x128xf32> to vector<8x1xf32>
    %c0_19 = arith.constant 0 : index
    %c0_20 = arith.constant 0 : index
    %30 = vector.load %arg8[%c0_19, %c0_20] : memref<8x1xf32, #tpu.memory_space<vmem>>, vector<8x1xf32>
    tpu.vector_store %arg8[%c0_19, %c0_20], %29 {strides = array<i32>} : memref<8x1xf32, #tpu.memory_space<vmem>>, vector<8x1xf32>,
    return
  }
  func.func @transform_0(%arg0: i32) -> (i32, i32) {
    %c0_i32 = arith.constant 0 : i32
    %c0_i32_0 = arith.constant 0 : i32
    return %arg0, %c0_i32 : i32, i32
  }
  func.func @transform_1(%arg0: i32) -> (i32, i32) {
    %c0_i32 = arith.constant 0 : i32
    %c0_i32_0 = arith.constant 0 : i32
    %c0_i32_1 = arith.constant 0 : i32
    return %c0_i32, %c0_i32_0 : i32, i32
  }
  func.func @transform_2(%arg0: i32) -> (i32, i32) {
    %c0_i32 = arith.constant 0 : i32
    %c0_i32_0 = arith.constant 0 : i32
    %c0_i32_1 = arith.constant 0 : i32
    return %c0_i32, %c0_i32_0 : i32, i32
  }
  func.func @transform_3(%arg0: i32) -> (i32, i32) {
    %c0_i32 = arith.constant 0 : i32
    %c0_i32_0 = arith.constant 0 : i32
    %c0_i32_1 = arith.constant 0 : i32
    return %c0_i32, %c0_i32_0 : i32, i32
  }
  func.func @transform_4(%arg0: i32) -> (i32, i32) {
    %c0_i32 = arith.constant 0 : i32
    %c0_i32_0 = arith.constant 0 : i32
    %c0_i32_1 = arith.constant 0 : i32
    return %c0_i32, %c0_i32_0 : i32, i32
  }
  func.func @transform_5(%arg0: i32) -> (i32, i32) {
    %c0_i32 = arith.constant 0 : i32
    %c0_i32_0 = arith.constant 0 : i32
    %c0_i32_1 = arith.constant 0 : i32
    return %c0_i32, %c0_i32_0 : i32, i32
  }
  func.func @transform_6(%arg0: i32) -> (i32, i32) {
    %c0_i32 = arith.constant 0 : i32
    %c0_i32_0 = arith.constant 0 : i32
    %c0_i32_1 = arith.constant 0 : i32
    return %c0_i32, %c0_i32_0 : i32, i32
  }
  func.func @transform_7(%arg0: i32) -> (i32, i32) {
    %c0_i32 = arith.constant 0 : i32
    %c0_i32_0 = arith.constant 0 : i32
    return %arg0, %c0_i32 : i32, i32
  }
}

</mosaic_0001>

<llo_original>
// kernel: rho_forward.1
$region0: #{rho_forward.1}
  #allocation0 [shape = 'u32[]', space=smem, size = 0x4, offset = 0x4, fixed_abs, tag = 'smem constant byte address 0x4 - core index']
  #allocation1 [shape = 'u32[144,128]{1,0:T(1,128)}', space=vmem, size = 0x12000, scoped, tag = 'internal scratch']
  %s0 = inlined_call_operand.vmem [shape: f32[16,128], index: 0, kind: input, shape index: {}]
  %s1 = inlined_call_operand.hbm [shape: bf16[128,128], index: 1, kind: input, shape index: {}]
  %s2 = inlined_call_operand.vmem [shape: f32[1,128], index: 2, kind: input, shape index: {}]
  %s3 = inlined_call_operand.hbm [shape: bf16[128,128], index: 3, kind: input, shape index: {}]
  %s4 = inlined_call_operand.vmem [shape: f32[1,128], index: 4, kind: input, shape index: {}]
  %s5 = inlined_call_operand.vmem [shape: bf16[128,128], index: 5, kind: input, shape index: {}]
  %s6 = inlined_call_operand.vmem [shape: f32[1,128], index: 6, kind: input, shape index: {}]
  %s7 = inlined_call_operand.vmem [shape: f32[16,1], index: 7, kind: output, shape index: {}]
  %s8 = sld [smem:[#allocation0]]
  $region69: #{rho_forward.1} parent=0
    _
  %s10 = ssub.s32 1, %s8
  %s11 = scalar_select 0, %s10, %s8
  $region1: #{rho_forward.1} parent=0
    #allocation2 [shape = 'u8[32768]{0}', space=vmem, size = 0x8000, scoped, tag = 'input window, operand 1, single buffered']
    #allocation3 [shape = 's32[2]{0}', space=sflag, size = 0x8, scoped, tag = 'scoped memory for rho_forward.1']
    #allocation4 [shape = 'u8[32768]{0}', space=vmem, size = 0x8000, scoped, tag = 'input window, operand 3, single buffered']
    #allocation5 [shape = 's32[1]{0}', space=sflag, size = 0x4, scoped, tag = 'scoped memory for rho_forward.1']
    %12 = vsyncpa [#allocation3], 0
    %13 = vsyncpa [#allocation5], 0
    loop: start=0, step=1, limit=4
    $region2: #{rho_forward.1} parent=1 // loop_pre_header
      _
    $region3: #{rho_forward.1} parent=1 // loop_header
      %s15 = sphi 0, %s19
      %p16 = scmp.ge.s32.totalorder %s15, 4
      %s25 = sphi 0, %s27
      %s28 = sphi 0, %s25
      %s29 = sphi 0, %s28
      %s45 = sphi 0, %s29
      %s49 = sphi 0, %s49
      %s51 = sphi 0, %s49
      %s52 = sphi 0, %s51
      %s66 = sphi 0, %s52
      %s70 = sphi 0, %s70
      %s72 = sphi 0, %s70
      %s73 = sphi 0, %s72
      %s87 = sphi 0, %s73
      %s91 = sphi 0, %s91
      %s93 = sphi 0, %s91
      %s94 = sphi 0, %s93
      %s108 = sphi 0, %s94
      %s112 = sphi 0, %s112
      %s114 = sphi 0, %s112
      %s115 = sphi 0, %s114
      %s129 = sphi 0, %s115
      %s133 = sphi 0, %s133
      %s135 = sphi 0, %s133
      %s136 = sphi 0, %s135
      %s150 = sphi 0, %s136
      %s154 = sphi 0, %s154
      %s156 = sphi 0, %s154
      %s157 = sphi 0, %s156
      %s171 = sphi 0, %s157
      %s177 = sphi 0, %s179
      %s180 = sphi 0, %s177
      %s181 = sphi 0, %s180
      %s197 = sphi 0, %s181
    $region4: #{rho_forward.1} parent=1 // loop_header_branch
      %18 = sbr.rel (%p16) target = $region8
    $region5: #{rho_forward.1} parent=1 // loop_body
      %s20 = ssub.s32 %s15, 1
      %s21 = ssub.s32 %s15, 2
      %s22 = sadd.s32 %s15, 1
      %s23 = ssub.s32 %s15, %s22
      %p24 = scmp.eq.s32.totalorder %s23, 0
      %s26 = sadd.s32 %s25, 1
      %s27 = scalar_select %p24, %s25, %s26
      %p30 = pneg %p24
      %p31 = scmp.eq.s32.totalorder %s15, 1
      %p32 = por %p30, %p31
      %p33 = scmp.ne.s32.totalorder %s25, %s28
      %p34 = scmp.eq.s32.totalorder %s15, 0
      %p35 = por %p33, %p34
      %p36 = scmp.ne.s32.totalorder %s25, %s28
      %p37 = scmp.eq.s32.totalorder %s20, 1
      %p38 = por %p36, %p37
      %p39 = scmp.ne.s32.totalorder %s28, %s29
      %p40 = scmp.eq.s32.totalorder %s20, 0
      %p41 = por %p39, %p40
      %p42 = scmp.ne.s32.totalorder %s28, %s29
      %p43 = scmp.eq.s32.totalorder %s21, 1
      %p44 = por %p42, %p43
      %p46 = scmp.ne.s32.totalorder %s29, %s45
      %p47 = scmp.eq.s32.totalorder %s21, 0
      %p48 = por %p46, %p47
      %s50 = sadd.s32 %s49, 1
      %p53 = scmp.eq.s32.totalorder %s15, 1
      %p54 = scmp.ne.s32.totalorder %s49, %s51
      %p55 = scmp.eq.s32.totalorder %s15, 0
      %p56 = por %p54, %p55
      %p57 = scmp.ne.s32.totalorder %s49, %s51
      %p58 = scmp.eq.s32.totalorder %s20, 1
      %p59 = por %p57, %p58
      %p60 = scmp.ne.s32.totalorder %s51, %s52
      %p61 = scmp.eq.s32.totalorder %s20, 0
      %p62 = por %p60, %p61
      %p63 = scmp.ne.s32.totalorder %s51, %s52
      %p64 = scmp.eq.s32.totalorder %s21, 1
      %p65 = por %p63, %p64
      %p67 = scmp.ne.s32.totalorder %s52, %s66
      %p68 = scmp.eq.s32.totalorder %s21, 0
      %p69 = por %p67, %p68
      %s71 = sadd.s32 %s70, 1
      %p74 = scmp.eq.s32.totalorder %s15, 1
      %p75 = scmp.ne.s32.totalorder %s70, %s72
      %p76 = scmp.eq.s32.totalorder %s15, 0
      %p77 = por %p75, %p76
      %p78 = scmp.ne.s32.totalorder %s70, %s72
      %p79 = scmp.eq.s32.totalorder %s20, 1
      %p80 = por %p78, %p79
      %p81 = scmp.ne.s32.totalorder %s72, %s73
      %p82 = scmp.eq.s32.totalorder %s20, 0
      %p83 = por %p81, %p82
      %p84 = scmp.ne.s32.totalorder %s72, %s73
      %p85 = scmp.eq.s32.totalorder %s21, 1
      %p86 = por %p84, %p85
      %p88 = scmp.ne.s32.totalorder %s73, %s87
      %p89 = scmp.eq.s32.totalorder %s21, 0
      %p90 = por %p88, %p89
      %s92 = sadd.s32 %s91, 1
      %p95 = scmp.eq.s32.totalorder %s15, 1
      %p96 = scmp.ne.s32.totalorder %s91, %s93
      %p97 = scmp.eq.s32.totalorder %s15, 0
      %p98 = por %p96, %p97
      %p99 = scmp.ne.s32.totalorder %s91, %s93
      %p100 = scmp.eq.s32.totalorder %s20, 1
      %p101 = por %p99, %p100
      %p102 = scmp.ne.s32.totalorder %s93, %s94
      %p103 = scmp.eq.s32.totalorder %s20, 0
      %p104 = por %p102, %p103
      %p105 = scmp.ne.s32.totalorder %s93, %s94
      %p106 = scmp.eq.s32.totalorder %s21, 1
      %p107 = por %p105, %p106
      %p109 = scmp.ne.s32.totalorder %s94, %s108
      %p110 = scmp.eq.s32.totalorder %s21, 0
      %p111 = por %p109, %p110
      %s113 = sadd.s32 %s112, 1
      %p116 = scmp.eq.s32.totalorder %s15, 1
      %p117 = scmp.ne.s32.totalorder %s112, %s114
      %p118 = scmp.eq.s32.totalorder %s15, 0
      %p119 = por %p117, %p118
      %p120 = scmp.ne.s32.totalorder %s112, %s114
      %p121 = scmp.eq.s32.totalorder %s20, 1
      %p122 = por %p120, %p121
      %p123 = scmp.ne.s32.totalorder %s114, %s115
      %p124 = scmp.eq.s32.totalorder %s20, 0
      %p125 = por %p123, %p124
      %p126 = scmp.ne.s32.totalorder %s114, %s115
      %p127 = scmp.eq.s32.totalorder %s21, 1
      %p128 = por %p126, %p127
      %p130 = scmp.ne.s32.totalorder %s115, %s129
      %p131 = scmp.eq.s32.totalorder %s21, 0
      %p132 = por %p130, %p131
      %s134 = sadd.s32 %s133, 1
      %p137 = scmp.eq.s32.totalorder %s15, 1
      %p138 = scmp.ne.s32.totalorder %s133, %s135
      %p139 = scmp.eq.s32.totalorder %s15, 0
      %p140 = por %p138, %p139
      %p141 = scmp.ne.s32.totalorder %s133, %s135
      %p142 = scmp.eq.s32.totalorder %s20, 1
      %p143 = por %p141, %p142
      %p144 = scmp.ne.s32.totalorder %s135, %s136
      %p145 = scmp.eq.s32.totalorder %s20, 0
      %p146 = por %p144, %p145
      %p147 = scmp.ne.s32.totalorder %s135, %s136
      %p148 = scmp.eq.s32.totalorder %s21, 1
      %p149 = por %p147, %p148
      %p151 = scmp.ne.s32.totalorder %s136, %s150
      %p152 = scmp.eq.s32.totalorder %s21, 0
      %p153 = por %p151, %p152
      %s155 = sadd.s32 %s154, 1
      %p158 = scmp.eq.s32.totalorder %s15, 1
      %p159 = scmp.ne.s32.totalorder %s154, %s156
      %p160 = scmp.eq.s32.totalorder %s15, 0
      %p161 = por %p159, %p160
      %p162 = scmp.ne.s32.totalorder %s154, %s156
      %p163 = scmp.eq.s32.totalorder %s20, 1
      %p164 = por %p162, %p163
      %p165 = scmp.ne.s32.totalorder %s156, %s157
      %p166 = scmp.eq.s32.totalorder %s20, 0
      %p167 = por %p165, %p166
      %p168 = scmp.ne.s32.totalorder %s156, %s157
      %p169 = scmp.eq.s32.totalorder %s21, 1
      %p170 = por %p168, %p169
      %p172 = scmp.ne.s32.totalorder %s157, %s171
      %p173 = scmp.eq.s32.totalorder %s21, 0
      %p174 = por %p172, %p173
      %s175 = ssub.s32 %s15, %s22
      %p176 = scmp.eq.s32.totalorder %s175, 0
      %s178 = sadd.s32 %s177, 1
      %s179 = scalar_select %p176, %s177, %s178
      %p182 = pneg %p176
      %p183 = scmp.eq.s32.totalorder %s15, 1
      %p184 = por %p182, %p183
      %p185 = scmp.ne.s32.totalorder %s177, %s180
      %p186 = scmp.eq.s32.totalorder %s15, 0
      %p187 = por %p185, %p186
      %p188 = scmp.ne.s32.totalorder %s177, %s180
      %p189 = scmp.eq.s32.totalorder %s20, 1
      %p190 = por %p188, %p189
      %p191 = scmp.ne.s32.totalorder %s180, %s181
      %p192 = scmp.eq.s32.totalorder %s20, 0
      %p193 = por %p191, %p192
      %p194 = scmp.ne.s32.totalorder %s180, %s181
      %p195 = scmp.eq.s32.totalorder %s21, 1
      %p196 = por %p194, %p195
      %p198 = scmp.ne.s32.totalorder %s181, %s197
      %p199 = scmp.eq.s32.totalorder %s21, 0
      %p200 = por %p198, %p199
      %p201 = scmp.le.s32.totalorder 1, %s15
      %p202 = scmp.lt.s32.totalorder %s15, 3
      %p203 = pnand %p201, %p202
      %p204 = pneg %p203
      // Predicated region
      $region9: #{rho_forward.1} parent=5 // pred_check
        _
      $region10: #{rho_forward.1} parent=5 // pred_check_branch
        %206 = sbr.rel (%p203) target = $region12
      $region11: #{rho_forward.1} parent=5 // pred_region
        %s207 = ssub.s32 %s15, 1
        // Predicated region
        $region13: #{rho_forward.1} parent=11 // pred_check
          %p208 = pneg %p62
        $region14: #{rho_forward.1} parent=11 // pred_check_branch
          %210 = sbr.rel (%p208) target = $region16
        $region15: #{rho_forward.1} parent=11 // pred_region
          %s212 = ssub.s32 1024, 1024
          %213 = vsyncadd [#allocation3], %s212
          %s214 = sshll.u32 [#allocation2], 4
          %s215 = int_to_ptr.vmem [resolvable:$true] %s214
          %220 = dma.hbm_to_vmem [thread:$0]  %s1, 1024, %s215, [#allocation3], 64, 64, 4
        $region16: #{rho_forward.1} parent=11 // pred_fallthru
          _
        // Predicated region
        $region17: #{rho_forward.1} parent=11 // pred_check
          %p221 = pneg %p83
        $region18: #{rho_forward.1} parent=11 // pred_check_branch
          %223 = sbr.rel (%p221) target = $region20
        $region19: #{rho_forward.1} parent=11 // pred_region
          _
        $region20: #{rho_forward.1} parent=11 // pred_fallthru
          _
        // Predicated region
        $region21: #{rho_forward.1} parent=11 // pred_check
          %p224 = pneg %p104
        $region22: #{rho_forward.1} parent=11 // pred_check_branch
          %226 = sbr.rel (%p224) target = $region24
        $region23: #{rho_forward.1} parent=11 // pred_region
          %s228 = ssub.s32 1024, 1024
          %229 = vsyncadd [#allocation5], %s228
          %s230 = sshll.u32 [#allocation4], 4
          %s231 = int_to_ptr.vmem [resolvable:$true] %s230
          %236 = dma.hbm_to_vmem [thread:$0]  %s3, 1024, %s231, [#allocation5], 64, 64, 4
        $region24: #{rho_forward.1} parent=11 // pred_fallthru
          _
        // Predicated region
        $region25: #{rho_forward.1} parent=11 // pred_check
          %p237 = pneg %p125
        $region26: #{rho_forward.1} parent=11 // pred_check_branch
          %239 = sbr.rel (%p237) target = $region28
        $region27: #{rho_forward.1} parent=11 // pred_region
          _
        $region28: #{rho_forward.1} parent=11 // pred_fallthru
          _
        // Predicated region
        $region29: #{rho_forward.1} parent=11 // pred_check
          %p240 = pneg %p146
        $region30: #{rho_forward.1} parent=11 // pred_check_branch
          %242 = sbr.rel (%p240) target = $region32
        $region31: #{rho_forward.1} parent=11 // pred_region
          _
        $region32: #{rho_forward.1} parent=11 // pred_fallthru
          _
        // Predicated region
        $region33: #{rho_forward.1} parent=11 // pred_check
          %p243 = pneg %p167
        $region34: #{rho_forward.1} parent=11 // pred_check_branch
          %245 = sbr.rel (%p243) target = $region36
        $region35: #{rho_forward.1} parent=11 // pred_region
          _
        $region36: #{rho_forward.1} parent=11 // pred_fallthru
          _
      $region12: #{rho_forward.1} parent=5 // pred_fallthru
        _
      %p246 = scmp.lt.s32.totalorder %s15, 2
      // Predicated region
      $region37: #{rho_forward.1} parent=5 // pred_check
        %p247 = pneg %p246
      $region38: #{rho_forward.1} parent=5 // pred_check_branch
        %249 = sbr.rel (%p247) target = $region40
      $region39: #{rho_forward.1} parent=5 // pred_region
        // Predicated region
        $region41: #{rho_forward.1} parent=39 // pred_check
          %p250 = pneg %p35
        $region42: #{rho_forward.1} parent=39 // pred_check_branch
          %252 = sbr.rel (%p250) target = $region44
        $region43: #{rho_forward.1} parent=39 // pred_region
          %p253 = scmp.lt.s32.totalorder %s15, 1
          %s254 = scalar_select %p253, %s15, 1
          %s255 = smul.addr %s254, 8
          %s256 = scalar_lea.vmem %s0, %s255
        $region44: #{rho_forward.1} parent=39 // pred_fallthru
          _
      $region40: #{rho_forward.1} parent=5 // pred_fallthru
        _
      %p257 = scmp.le.s32.totalorder 1, %s15
      %p258 = scmp.lt.s32.totalorder %s15, 3
      %p259 = pnand %p257, %p258
      %p260 = pneg %p259
      // Predicated region
      $region45: #{rho_forward.1} parent=5 // pred_check
        _
      $region46: #{rho_forward.1} parent=5 // pred_check_branch
        %262 = sbr.rel (%p259) target = $region48
      $region47: #{rho_forward.1} parent=5 // pred_region
        %s263 = ssub.s32 %s15, 1
        // Predicated region
        $region49: #{rho_forward.1} parent=47 // pred_check
          %p264 = pneg %p62
        $region50: #{rho_forward.1} parent=47 // pred_check_branch
          %266 = sbr.rel (%p264) target = $region52
        $region51: #{rho_forward.1} parent=47 // pred_region
          %267 = dma.done [#allocation3], 1024
        $region52: #{rho_forward.1} parent=47 // pred_fallthru
          _
        // Predicated region
        $region53: #{rho_forward.1} parent=47 // pred_check
          %p268 = pneg %p104
        $region54: #{rho_forward.1} parent=47 // pred_check_branch
          %270 = sbr.rel (%p268) target = $region56
        $region55: #{rho_forward.1} parent=47 // pred_region
          %271 = dma.done [#allocation5], 1024
        $region56: #{rho_forward.1} parent=47 // pred_fallthru
          _
        %p272 = scmp.lt.s32.totalorder %s20, 1
        %s273 = scalar_select %p272, %s20, 1
        %s274 = smul.addr %s273, 8
        %s275 = scalar_lea.vmem %s0, %s274
        %p276 = pneg %p41
        %p277 = pneg %p38
        %p278 = pneg %p62
        %p279 = pneg %p59
        %p280 = pneg %p83
        %p281 = pneg %p80
        %p282 = pneg %p104
        %p283 = pneg %p101
        %p284 = pneg %p125
        %p285 = pneg %p122
        %p286 = pneg %p146
        %p287 = pneg %p143
        %p288 = pneg %p167
        %p289 = pneg %p164
        %p290 = pneg %p193
        %p291 = pneg %p190
        %p292 = scmp.lt.s32.totalorder %s20, 1
        %s293 = scalar_select %p292, %s20, 1
        %s294 = smul.addr %s293, 8
        %s295 = scalar_lea.vmem %s7, %s294
        %p296 = scmp.lt.s32.totalorder %s20, 1
        %s297 = scalar_select %p296, %s20, 1
        %s298 = smul.addr %s297, 8
        %s299 = scalar_lea.vmem %s0, %s298
        %p300 = scmp.lt.s32.totalorder %s20, 1
        %s301 = scalar_select %p300, %s20, 1
        %s302 = smul.addr %s301, 8
        %s303 = scalar_lea.vmem %s7, %s302
        %v305 = vld [vmem:[%s299] sm:$0xff]
        %v306 = vpack.c.bf16 %v305, %v305
        %v307 = vld [vmem:[#allocation2] sm:$0xf]
        %v308 = vld [vmem:[#allocation2 + $0x4] sm:$0xf]
        %v309 = vld [vmem:[#allocation2 + $0x8] sm:$0xf]
        %v310 = vld [vmem:[#allocation2 + $0xc] sm:$0xf]
        %v311 = vld [vmem:[#allocation2 + $0x10] sm:$0xf]
        %v312 = vld [vmem:[#allocation2 + $0x14] sm:$0xf]
        %v313 = vld [vmem:[#allocation2 + $0x18] sm:$0xf]
        %v314 = vld [vmem:[#allocation2 + $0x1c] sm:$0xf]
        %v315 = vld [vmem:[#allocation2 + $0x20] sm:$0xf]
        %v316 = vld [vmem:[#allocation2 + $0x24] sm:$0xf]
        %v317 = vld [vmem:[#allocation2 + $0x28] sm:$0xf]
        %v318 = vld [vmem:[#allocation2 + $0x2c] sm:$0xf]
        %v319 = vld [vmem:[#allocation2 + $0x30] sm:$0xf]
        %v320 = vld [vmem:[#allocation2 + $0x34] sm:$0xf]
        %v321 = vld [vmem:[#allocation2 + $0x38] sm:$0xf]
        %v322 = vld [vmem:[#allocation2 + $0x3c] sm:$0xf]
        %v323 = vld [vmem:[%s2] sm:$0x1]
        %v325 = vlaneseq
        %v326 = vshrl.u32 %v325, 7
        %v327 = vsub.s32 0, %v326
        %v328 = vrot.slane %v323, %v327
        %v346 = vunpack.c.l.b16 %v307
        %v347 = vunpack.c.l.b16 %v308
        %v348 = vunpack.c.l.b16 %v309
        %v349 = vunpack.c.l.b16 %v310
        %v350 = vunpack.c.l.b16 %v311
        %v351 = vunpack.c.l.b16 %v312
        %v352 = vunpack.c.l.b16 %v313
        %v353 = vunpack.c.l.b16 %v314
        %v354 = vunpack.c.l.b16 %v315
        %v355 = vunpack.c.l.b16 %v316
        %v356 = vunpack.c.l.b16 %v317
        %v357 = vunpack.c.l.b16 %v318
        %v358 = vunpack.c.l.b16 %v319
        %v359 = vunpack.c.l.b16 %v320
        %v360 = vunpack.c.l.b16 %v321
        %v361 = vunpack.c.l.b16 %v322
        %v362 = vpack.c.b16 %v347, %v346
        %v363 = vpack.c.b16 %v349, %v348
        %v364 = vpack.c.b16 %v351, %v350
        %v365 = vpack.c.b16 %v353, %v352
        %v366 = vpack.c.b16 %v355, %v354
        %v367 = vpack.c.b16 %v357, %v356
        %v368 = vpack.c.b16 %v359, %v358
        %v369 = vpack.c.b16 %v361, %v360
        %378 = vmatprep.subr.bf16.mxu0 0
        %379 = vmatpush1.bf16.msra.mxu0 %v362
        %380 = vmatprep.subr.bf16.mxu0 0
        %381 = vmatpush1.bf16.msra.mxu0 %v363
        %382 = vmatprep.subr.bf16.mxu0 0
        %383 = vmatpush1.bf16.msra.mxu0 %v364
        %384 = vmatprep.subr.bf16.mxu0 0
        %385 = vmatpush1.bf16.msra.mxu0 %v365
        %386 = vmatprep.subr.bf16.mxu0 0
        %387 = vmatpush1.bf16.msra.mxu0 %v366
        %388 = vmatprep.subr.bf16.mxu0 0
        %389 = vmatpush1.bf16.msra.mxu0 %v367
        %390 = vmatprep.subr.bf16.mxu0 0
        %391 = vmatpush1.bf16.msra.mxu0 %v368
        %392 = vmatprep.subr.bf16.mxu0 0
        %393 = vmatpush1.bf16.msra.mxu0 %v369
        %394 = vmatprep.subr.bf16.mxu0 0
        %395 = vmatpush1.bf16.msra.mxu0 0
        %396 = vmatprep.subr.bf16.mxu0 0
        %397 = vmatpush1.bf16.msra.mxu0 0
        %398 = vmatprep.subr.bf16.mxu0 0
        %399 = vmatpush1.bf16.msra.mxu0 0
        %400 = vmatprep.subr.bf16.mxu0 0
        %401 = vmatpush1.bf16.msra.mxu0 0
        %402 = vmatprep.subr.bf16.mxu0 0
        %403 = vmatpush1.bf16.msra.mxu0 0
        %404 = vmatprep.subr.bf16.mxu0 0
        %405 = vmatpush1.bf16.msra.mxu0 0
        %406 = vmatprep.subr.bf16.mxu0 0
        %407 = vmatpush1.bf16.msra.mxu0 0
        %408 = vmatprep.subr.bf16.mxu0 0
        %409 = vmatpush1.bf16.msra.mxu0 0
        %410 = vmatprep.mubr.bf16.mxu0 0
        %411 = vmatmul.mubr.bf16.gmra.mrb[0].mxu0 %v306
        %v412 = vpop.f32.mrb[0].mxu0
        %v413 = vadd.f32 %v328, %v412
        %v414 = vpop.f32.mrb[0].mxu0
        %v415 = vpop.f32.mrb[0].mxu0
        %v416 = vpop.f32.mrb[0].mxu0
        %417 = vdwg.mxu0
        %vm418 = vcmp.ge.f32.partialorder %v413, 0.0
        %v419 = vmul.f32 %v413, 0.01
        %v420 = vsel %vm418, %v413, %v419
        %v421 = vpack.c.bf16 %v420, %v420
        %v422 = vld [vmem:[#allocation4] sm:$0xf]
        %v423 = vld [vmem:[#allocation4 + $0x4] sm:$0xf]
        %v424 = vld [vmem:[#allocation4 + $0x8] sm:$0xf]
        %v425 = vld [vmem:[#allocation4 + $0xc] sm:$0xf]
        %v426 = vld [vmem:[#allocation4 + $0x10] sm:$0xf]
        %v427 = vld [vmem:[#allocation4 + $0x14] sm:$0xf]
        %v428 = vld [vmem:[#allocation4 + $0x18] sm:$0xf]
        %v429 = vld [vmem:[#allocation4 + $0x1c] sm:$0xf]
        %v430 = vld [vmem:[#allocation4 + $0x20] sm:$0xf]
        %v431 = vld [vmem:[#allocation4 + $0x24] sm:$0xf]
        %v432 = vld [vmem:[#allocation4 + $0x28] sm:$0xf]
        %v433 = vld [vmem:[#allocation4 + $0x2c] sm:$0xf]
        %v434 = vld [vmem:[#allocation4 + $0x30] sm:$0xf]
        %v435 = vld [vmem:[#allocation4 + $0x34] sm:$0xf]
        %v436 = vld [vmem:[#allocation4 + $0x38] sm:$0xf]
        %v437 = vld [vmem:[#allocation4 + $0x3c] sm:$0xf]
        %v438 = vld [vmem:[%s4] sm:$0x1]
        %v440 = vlaneseq
        %v441 = vshrl.u32 %v440, 7
        %v442 = vsub.s32 0, %v441
        %v443 = vrot.slane %v438, %v442
        %v461 = vunpack.c.l.b16 %v422
        %v462 = vunpack.c.l.b16 %v423
        %v463 = vunpack.c.l.b16 %v424
        %v464 = vunpack.c.l.b16 %v425
        %v465 = vunpack.c.l.b16 %v426
        %v466 = vunpack.c.l.b16 %v427
        %v467 = vunpack.c.l.b16 %v428
        %v468 = vunpack.c.l.b16 %v429
        %v469 = vunpack.c.l.b16 %v430
        %v470 = vunpack.c.l.b16 %v431
        %v471 = vunpack.c.l.b16 %v432
        %v472 = vunpack.c.l.b16 %v433
        %v473 = vunpack.c.l.b16 %v434
        %v474 = vunpack.c.l.b16 %v435
        %v475 = vunpack.c.l.b16 %v436
        %v476 = vunpack.c.l.b16 %v437
        %v477 = vpack.c.b16 %v462, %v461
        %v478 = vpack.c.b16 %v464, %v463
        %v479 = vpack.c.b16 %v466, %v465
        %v480 = vpack.c.b16 %v468, %v467
        %v481 = vpack.c.b16 %v470, %v469
        %v482 = vpack.c.b16 %v472, %v471
        %v483 = vpack.c.b16 %v474, %v473
        %v484 = vpack.c.b16 %v476, %v475
        %493 = vmatprep.subr.bf16.mxu0 0
        %494 = vmatpush1.bf16.msra.mxu0 %v477
        %495 = vmatprep.subr.bf16.mxu0 0
        %496 = vmatpush1.bf16.msra.mxu0 %v478
        %497 = vmatprep.subr.bf16.mxu0 0
        %498 = vmatpush1.bf16.msra.mxu0 %v479
        %499 = vmatprep.subr.bf16.mxu0 0
        %500 = vmatpush1.bf16.msra.mxu0 %v480
        %501 = vmatprep.subr.bf16.mxu0 0
        %502 = vmatpush1.bf16.msra.mxu0 %v481
        %503 = vmatprep.subr.bf16.mxu0 0
        %504 = vmatpush1.bf16.msra.mxu0 %v482
        %505 = vmatprep.subr.bf16.mxu0 0
        %506 = vmatpush1.bf16.msra.mxu0 %v483
        %507 = vmatprep.subr.bf16.mxu0 0
        %508 = vmatpush1.bf16.msra.mxu0 %v484
        %509 = vmatprep.subr.bf16.mxu0 0
        %510 = vmatpush1.bf16.msra.mxu0 0
        %511 = vmatprep.subr.bf16.mxu0 0
        %512 = vmatpush1.bf16.msra.mxu0 0
        %513 = vmatprep.subr.bf16.mxu0 0
        %514 = vmatpush1.bf16.msra.mxu0 0
        %515 = vmatprep.subr.bf16.mxu0 0
        %516 = vmatpush1.bf16.msra.mxu0 0
        %517 = vmatprep.subr.bf16.mxu0 0
        %518 = vmatpush1.bf16.msra.mxu0 0
        %519 = vmatprep.subr.bf16.mxu0 0
        %520 = vmatpush1.bf16.msra.mxu0 0
        %521 = vmatprep.subr.bf16.mxu0 0
        %522 = vmatpush1.bf16.msra.mxu0 0
        %523 = vmatprep.subr.bf16.mxu0 0
        %524 = vmatpush1.bf16.msra.mxu0 0
        %525 = vmatprep.mubr.bf16.mxu0 0
        %526 = vmatmul.mubr.bf16.gmra.mrb[0].mxu0 %v421
        %v527 = vpop.f32.mrb[0].mxu0
        %v528 = vadd.f32 %v443, %v527
        %v529 = vpop.f32.mrb[0].mxu0
        %v530 = vpop.f32.mrb[0].mxu0
        %v531 = vpop.f32.mrb[0].mxu0
        %532 = vdwg.mxu0
        %vm533 = vcmp.ge.f32.partialorder %v528, 0.0
        %v534 = vmul.f32 %v528, 0.01
        %v535 = vsel %vm533, %v528, %v534
        %v536 = vpack.c.bf16 %v535, %v535
        %v537 = vld [vmem:[%s5] sm:$0xf]
        %v538 = vld [vmem:[%s5 + $0x4] sm:$0xf]
        %v539 = vld [vmem:[%s5 + $0x8] sm:$0xf]
        %v540 = vld [vmem:[%s5 + $0xc] sm:$0xf]
        %v541 = vld [vmem:[%s5 + $0x10] sm:$0xf]
        %v542 = vld [vmem:[%s5 + $0x14] sm:$0xf]
        %v543 = vld [vmem:[%s5 + $0x18] sm:$0xf]
        %v544 = vld [vmem:[%s5 + $0x1c] sm:$0xf]
        %v545 = vld [vmem:[%s5 + $0x20] sm:$0xf]
        %v546 = vld [vmem:[%s5 + $0x24] sm:$0xf]
        %v547 = vld [vmem:[%s5 + $0x28] sm:$0xf]
        %v548 = vld [vmem:[%s5 + $0x2c] sm:$0xf]
        %v549 = vld [vmem:[%s5 + $0x30] sm:$0xf]
        %v550 = vld [vmem:[%s5 + $0x34] sm:$0xf]
        %v551 = vld [vmem:[%s5 + $0x38] sm:$0xf]
        %v552 = vld [vmem:[%s5 + $0x3c] sm:$0xf]
        %v553 = vld [vmem:[%s6] sm:$0x1]
        %v555 = vlaneseq
        %v556 = vshrl.u32 %v555, 7
        %v557 = vsub.s32 0, %v556
        %v558 = vrot.slane %v553, %v557
        %v576 = vunpack.c.l.b16 %v537
        %v577 = vunpack.c.l.b16 %v538
        %v578 = vunpack.c.l.b16 %v539
        %v579 = vunpack.c.l.b16 %v540
        %v580 = vunpack.c.l.b16 %v541
        %v581 = vunpack.c.l.b16 %v542
        %v582 = vunpack.c.l.b16 %v543
        %v583 = vunpack.c.l.b16 %v544
        %v584 = vunpack.c.l.b16 %v545
        %v585 = vunpack.c.l.b16 %v546
        %v586 = vunpack.c.l.b16 %v547
        %v587 = vunpack.c.l.b16 %v548
        %v588 = vunpack.c.l.b16 %v549
        %v589 = vunpack.c.l.b16 %v550
        %v590 = vunpack.c.l.b16 %v551
        %v591 = vunpack.c.l.b16 %v552
        %v592 = vpack.c.b16 %v577, %v576
        %v593 = vpack.c.b16 %v579, %v578
        %v594 = vpack.c.b16 %v581, %v580
        %v595 = vpack.c.b16 %v583, %v582
        %v596 = vpack.c.b16 %v585, %v584
        %v597 = vpack.c.b16 %v587, %v586
        %v598 = vpack.c.b16 %v589, %v588
        %v599 = vpack.c.b16 %v591, %v590
        %608 = vmatprep.subr.bf16.mxu0 0
        %609 = vmatpush1.bf16.msra.mxu0 %v592
        %610 = vmatprep.subr.bf16.mxu0 0
        %611 = vmatpush1.bf16.msra.mxu0 %v593
        %612 = vmatprep.subr.bf16.mxu0 0
        %613 = vmatpush1.bf16.msra.mxu0 %v594
        %614 = vmatprep.subr.bf16.mxu0 0
        %615 = vmatpush1.bf16.msra.mxu0 %v595
        %616 = vmatprep.subr.bf16.mxu0 0
        %617 = vmatpush1.bf16.msra.mxu0 %v596
        %618 = vmatprep.subr.bf16.mxu0 0
        %619 = vmatpush1.bf16.msra.mxu0 %v597
        %620 = vmatprep.subr.bf16.mxu0 0
        %621 = vmatpush1.bf16.msra.mxu0 %v598
        %622 = vmatprep.subr.bf16.mxu0 0
        %623 = vmatpush1.bf16.msra.mxu0 %v599
        %624 = vmatprep.subr.bf16.mxu0 0
        %625 = vmatpush1.bf16.msra.mxu0 0
        %626 = vmatprep.subr.bf16.mxu0 0
        %627 = vmatpush1.bf16.msra.mxu0 0
        %628 = vmatprep.subr.bf16.mxu0 0
        %629 = vmatpush1.bf16.msra.mxu0 0
        %630 = vmatprep.subr.bf16.mxu0 0
        %631 = vmatpush1.bf16.msra.mxu0 0
        %632 = vmatprep.subr.bf16.mxu0 0
        %633 = vmatpush1.bf16.msra.mxu0 0
        %634 = vmatprep.subr.bf16.mxu0 0
        %635 = vmatpush1.bf16.msra.mxu0 0
        %636 = vmatprep.subr.bf16.mxu0 0
        %637 = vmatpush1.bf16.msra.mxu0 0
        %638 = vmatprep.subr.bf16.mxu0 0
        %639 = vmatpush1.bf16.msra.mxu0 0
        %640 = vmatprep.mubr.bf16.mxu0 0
        %641 = vmatmul.mubr.bf16.gmra.mrb[0].mxu0 %v536
        %v642 = vpop.f32.mrb[0].mxu0
        %v643 = vadd.f32 %v558, %v642
        %v644 = vpop.f32.mrb[0].mxu0
        %v645 = vpop.f32.mrb[0].mxu0
        %v646 = vpop.f32.mrb[0].mxu0
        %647 = vdwg.mxu0
        %vm648 = vcmask 7168
        %649 = vst.msk [vmem:[%s303] sm:$0xff] %vm648, %v643
        %p650 = scmp.lt.s32.totalorder %s20, 1
        %s651 = scalar_select %p650, %s20, 1
        %s652 = smul.addr %s651, 8
        %s653 = scalar_lea.vmem %s7, %s652
        // Predicated region
        $region57: #{rho_forward.1} parent=47 // pred_check
          %p654 = pneg %p190
        $region58: #{rho_forward.1} parent=47 // pred_check_branch
          %656 = sbr.rel (%p654) target = $region60
        $region59: #{rho_forward.1} parent=47 // pred_region
          _
        $region60: #{rho_forward.1} parent=47 // pred_fallthru
          _
      $region48: #{rho_forward.1} parent=5 // pred_fallthru
        _
      %p657 = scmp.le.s32.totalorder 2, %s15
      // Predicated region
      $region61: #{rho_forward.1} parent=5 // pred_check
        %p658 = pneg %p657
      $region62: #{rho_forward.1} parent=5 // pred_check_branch
        %660 = sbr.rel (%p658) target = $region64
      $region63: #{rho_forward.1} parent=5 // pred_region
        %s661 = ssub.s32 %s15, 2
        // Predicated region
        $region65: #{rho_forward.1} parent=63 // pred_check
          %p662 = pneg %p196
        $region66: #{rho_forward.1} parent=63 // pred_check_branch
          %664 = sbr.rel (%p662) target = $region68
        $region67: #{rho_forward.1} parent=63 // pred_region
          %p665 = scmp.lt.s32.totalorder %s21, 1
          %s666 = scalar_select %p665, %s21, 1
          %s667 = smul.addr %s666, 8
          %s668 = scalar_lea.vmem %s7, %s667
        $region68: #{rho_forward.1} parent=63 // pred_fallthru
          _
      $region64: #{rho_forward.1} parent=5 // pred_fallthru
        _
    $region6: #{rho_forward.1} parent=1 // loop_footer
      %s19 = sadd.s32 1, %s15
    $region7: #{rho_forward.1} parent=1 // loop_footer_branch
      %14 = sbr.rel target = $region3
    $region8: #{rho_forward.1} parent=1 // loop_exit
      _
    %669 = vsyncpa [#allocation3], 1
    %s670 = scalar_lea.sflag [#allocation3], 1
    %671 = vsyncpa %s670, 1
    %672 = vsyncpa [#allocation5], 1

// kernel: rho_forward.1
$region0: #{rho_forward.1}
  #allocation0 [shape = 'u32[]', space=smem, size = 0x4, offset = 0x4, fixed_abs, tag = 'smem constant byte address 0x4 - core index']
  #allocation1 [shape = 'u32[144,128]{1,0:T(1,128)}', space=vmem, size = 0x12000, scoped, tag = 'internal scratch']
  %s0 = inlined_call_operand.vmem [shape: f32[16,128], index: 0, kind: input, shape index: {}]
  %s1 = inlined_call_operand.hbm [shape: bf16[128,128], index: 1, kind: input, shape index: {}]
  %s2 = inlined_call_operand.vmem [shape: f32[1,128], index: 2, kind: input, shape index: {}]
  %s3 = inlined_call_operand.hbm [shape: bf16[128,128], index: 3, kind: input, shape index: {}]
  %s4 = inlined_call_operand.vmem [shape: f32[1,128], index: 4, kind: input, shape index: {}]
  %s5 = inlined_call_operand.vmem [shape: bf16[128,128], index: 5, kind: input, shape index: {}]
  %s6 = inlined_call_operand.vmem [shape: f32[1,128], index: 6, kind: input, shape index: {}]
  %s7 = inlined_call_operand.vmem [shape: f32[16,1], index: 7, kind: output, shape index: {}]
  %s8 = sld [smem:[#allocation0]]
  $region69: #{rho_forward.1} parent=0
    _
  %s10 = ssub.s32 1, %s8
  %s11 = scalar_select 0, %s10, %s8
  $region1: #{rho_forward.1} parent=0
    #allocation2 [shape = 'u8[32768]{0}', space=vmem, size = 0x8000, scoped, tag = 'input window, operand 1, single buffered']
    #allocation3 [shape = 's32[2]{0}', space=sflag, size = 0x8, scoped, tag = 'scoped memory for rho_forward.1']
    #allocation4 [shape = 'u8[32768]{0}', space=vmem, size = 0x8000, scoped, tag = 'input window, operand 3, single buffered']
    #allocation5 [shape = 's32[1]{0}', space=sflag, size = 0x4, scoped, tag = 'scoped memory for rho_forward.1']
    %12 = vsyncpa [#allocation3], 0
    %13 = vsyncpa [#allocation5], 0
    loop: start=0, step=1, limit=4
    $region2: #{rho_forward.1} parent=1 // loop_pre_header
      _
    $region3: #{rho_forward.1} parent=1 // loop_header
      %s15 = sphi 0, %s19
      %p16 = scmp.ge.s32.totalorder %s15, 4
      %s25 = sphi 0, %s27
      %s28 = sphi 0, %s25
      %s29 = sphi 0, %s28
      %s45 = sphi 0, %s29
      %s49 = sphi 0, %s49
      %s51 = sphi 0, %s49
      %s52 = sphi 0, %s51
      %s66 = sphi 0, %s52
      %s70 = sphi 0, %s70
      %s72 = sphi 0, %s70
      %s73 = sphi 0, %s72
      %s87 = sphi 0, %s73
      %s91 = sphi 0, %s91
      %s93 = sphi 0, %s91
      %s94 = sphi 0, %s93
      %s108 = sphi 0, %s94
      %s112 = sphi 0, %s112
      %s114 = sphi 0, %s112
      %s115 = sphi 0, %s114
      %s129 = sphi 0, %s115
      %s133 = sphi 0, %s133
      %s135 = sphi 0, %s133
      %s136 = sphi 0, %s135
      %s150 = sphi 0, %s136
      %s154 = sphi 0, %s154
      %s156 = sphi 0, %s154
      %s157 = sphi 0, %s156
      %s171 = sphi 0, %s157
      %s177 = sphi 0, %s179
      %s180 = sphi 0, %s177
      %s181 = sphi 0, %s180
      %s197 = sphi 0, %s181
    $region4: #{rho_forward.1} parent=1 // loop_header_branch
      %18 = sbr.rel (%p16) target = $region8
    $region5: #{rho_forward.1} parent=1 // loop_body
      %s20 = ssub.s32 %s15, 1
      %s21 = ssub.s32 %s15, 2
      %s22 = sadd.s32 %s15, 1
      %s23 = ssub.s32 %s15, %s22
      %p24 = scmp.eq.s32.totalorder %s23, 0
      %s26 = sadd.s32 %s25, 1
      %s27 = scalar_select %p24, %s25, %s26
      %p30 = pneg %p24
      %p31 = scmp.eq.s32.totalorder %s15, 1
      %p32 = por %p30, %p31
      %p33 = scmp.ne.s32.totalorder %s25, %s28
      %p34 = scmp.eq.s32.totalorder %s15, 0
      %p35 = por %p33, %p34
      %p36 = scmp.ne.s32.totalorder %s25, %s28
      %p37 = scmp.eq.s32.totalorder %s20, 1
      %p38 = por %p36, %p37
      %p39 = scmp.ne.s32.totalorder %s28, %s29
      %p40 = scmp.eq.s32.totalorder %s20, 0
      %p41 = por %p39, %p40
      %p42 = scmp.ne.s32.totalorder %s28, %s29
      %p43 = scmp.eq.s32.totalorder %s21, 1
      %p44 = por %p42, %p43
      %p46 = scmp.ne.s32.totalorder %s29, %s45
      %p47 = scmp.eq.s32.totalorder %s21, 0
      %p48 = por %p46, %p47
      %s50 = sadd.s32 %s49, 1
      %p53 = scmp.eq.s32.totalorder %s15, 1
      %p54 = scmp.ne.s32.totalorder %s49, %s51
      %p55 = scmp.eq.s32.totalorder %s15, 0
      %p56 = por %p54, %p55
      %p57 = scmp.ne.s32.totalorder %s49, %s51
      %p58 = scmp.eq.s32.totalorder %s20, 1
      %p59 = por %p57, %p58
      %p60 = scmp.ne.s32.totalorder %s51, %s52
      %p61 = scmp.eq.s32.totalorder %s20, 0
      %p62 = por %p60, %p61
      %p63 = scmp.ne.s32.totalorder %s51, %s52
      %p64 = scmp.eq.s32.totalorder %s21, 1
      %p65 = por %p63, %p64
      %p67 = scmp.ne.s32.totalorder %s52, %s66
      %p68 = scmp.eq.s32.totalorder %s21, 0
      %p69 = por %p67, %p68
      %s71 = sadd.s32 %s70, 1
      %p74 = scmp.eq.s32.totalorder %s15, 1
      %p75 = scmp.ne.s32.totalorder %s70, %s72
      %p76 = scmp.eq.s32.totalorder %s15, 0
      %p77 = por %p75, %p76
      %p78 = scmp.ne.s32.totalorder %s70, %s72
      %p79 = scmp.eq.s32.totalorder %s20, 1
      %p80 = por %p78, %p79
      %p81 = scmp.ne.s32.totalorder %s72, %s73
      %p82 = scmp.eq.s32.totalorder %s20, 0
      %p83 = por %p81, %p82
      %p84 = scmp.ne.s32.totalorder %s72, %s73
      %p85 = scmp.eq.s32.totalorder %s21, 1
      %p86 = por %p84, %p85
      %p88 = scmp.ne.s32.totalorder %s73, %s87
      %p89 = scmp.eq.s32.totalorder %s21, 0
      %p90 = por %p88, %p89
      %s92 = sadd.s32 %s91, 1
      %p95 = scmp.eq.s32.totalorder %s15, 1
      %p96 = scmp.ne.s32.totalorder %s91, %s93
      %p97 = scmp.eq.s32.totalorder %s15, 0
      %p98 = por %p96, %p97
      %p99 = scmp.ne.s32.totalorder %s91, %s93
      %p100 = scmp.eq.s32.totalorder %s20, 1
      %p101 = por %p99, %p100
      %p102 = scmp.ne.s32.totalorder %s93, %s94
      %p103 = scmp.eq.s32.totalorder %s20, 0
      %p104 = por %p102, %p103
      %p105 = scmp.ne.s32.totalorder %s93, %s94
      %p106 = scmp.eq.s32.totalorder %s21, 1
      %p107 = por %p105, %p106
      %p109 = scmp.ne.s32.totalorder %s94, %s108
      %p110 = scmp.eq.s32.totalorder %s21, 0
      %p111 = por %p109, %p110
      %s113 = sadd.s32 %s112, 1
      %p116 = scmp.eq.s32.totalorder %s15, 1
      %p117 = scmp.ne.s32.totalorder %s112, %s114
      %p118 = scmp.eq.s32.totalorder %s15, 0
      %p119 = por %p117, %p118
      %p120 = scmp.ne.s32.totalorder %s112, %s114
      %p121 = scmp.eq.s32.totalorder %s20, 1
      %p122 = por %p120, %p121
      %p123 = scmp.ne.s32.totalorder %s114, %s115
      %p124 = scmp.eq.s32.totalorder %s20, 0
      %p125 = por %p123, %p124
      %p126 = scmp.ne.s32.totalorder %s114, %s115
      %p127 = scmp.eq.s32.totalorder %s21, 1
      %p128 = por %p126, %p127
      %p130 = scmp.ne.s32.totalorder %s115, %s129
      %p131 = scmp.eq.s32.totalorder %s21, 0
      %p132 = por %p130, %p131
      %s134 = sadd.s32 %s133, 1
      %p137 = scmp.eq.s32.totalorder %s15, 1
      %p138 = scmp.ne.s32.totalorder %s133, %s135
      %p139 = scmp.eq.s32.totalorder %s15, 0
      %p140 = por %p138, %p139
      %p141 = scmp.ne.s32.totalorder %s133, %s135
      %p142 = scmp.eq.s32.totalorder %s20, 1
      %p143 = por %p141, %p142
      %p144 = scmp.ne.s32.totalorder %s135, %s136
      %p145 = scmp.eq.s32.totalorder %s20, 0
      %p146 = por %p144, %p145
      %p147 = scmp.ne.s32.totalorder %s135, %s136
      %p148 = scmp.eq.s32.totalorder %s21, 1
      %p149 = por %p147, %p148
      %p151 = scmp.ne.s32.totalorder %s136, %s150
      %p152 = scmp.eq.s32.totalorder %s21, 0
      %p153 = por %p151, %p152
      %s155 = sadd.s32 %s154, 1
      %p158 = scmp.eq.s32.totalorder %s15, 1
      %p159 = scmp.ne.s32.totalorder %s154, %s156
      %p160 = scmp.eq.s32.totalorder %s15, 0
      %p161 = por %p159, %p160
      %p162 = scmp.ne.s32.totalorder %s154, %s156
      %p163 = scmp.eq.s32.totalorder %s20, 1
      %p164 = por %p162, %p163
      %p165 = scmp.ne.s32.totalorder %s156, %s157
      %p166 = scmp.eq.s32.totalorder %s20, 0
      %p167 = por %p165, %p166
      %p168 = scmp.ne.s32.totalorder %s156, %s157
      %p169 = scmp.eq.s32.totalorder %s21, 1
      %p170 = por %p168, %p169
      %p172 = scmp.ne.s32.totalorder %s157, %s171
      %p173 = scmp.eq.s32.totalorder %s21, 0
      %p174 = por %p172, %p173
      %s175 = ssub.s32 %s15, %s22
      %p176 = scmp.eq.s32.totalorder %s175, 0
      %s178 = sadd.s32 %s177, 1
      %s179 = scalar_select %p176, %s177, %s178
      %p182 = pneg %p176
      %p183 = scmp.eq.s32.totalorder %s15, 1
      %p184 = por %p182, %p183
      %p185 = scmp.ne.s32.totalorder %s177, %s180
      %p186 = scmp.eq.s32.totalorder %s15, 0
      %p187 = por %p185, %p186
      %p188 = scmp.ne.s32.totalorder %s177, %s180
      %p189 = scmp.eq.s32.totalorder %s20, 1
      %p190 = por %p188, %p189
      %p191 = scmp.ne.s32.totalorder %s180, %s181
      %p192 = scmp.eq.s32.totalorder %s20, 0
      %p193 = por %p191, %p192
      %p194 = scmp.ne.s32.totalorder %s180, %s181
      %p195 = scmp.eq.s32.totalorder %s21, 1
      %p196 = por %p194, %p195
      %p198 = scmp.ne.s32.totalorder %s181, %s197
      %p199 = scmp.eq.s32.totalorder %s21, 0
      %p200 = por %p198, %p199
      %p201 = scmp.le.s32.totalorder 1, %s15
      %p202 = scmp.lt.s32.totalorder %s15, 3
      %p203 = pnand %p201, %p202
      %p204 = pneg %p203
      // Predicated region
      $region9: #{rho_forward.1} parent=5 // pred_check
        _
      $region10: #{rho_forward.1} parent=5 // pred_check_branch
        %206 = sbr.rel (%p203) target = $region12
      $region11: #{rho_forward.1} parent=5 // pred_region
        %s207 = ssub.s32 %s15, 1
        // Predicated region
        $region13: #{rho_forward.1} parent=11 // pred_check
          %p208 = pneg %p62
        $region14: #{rho_forward.1} parent=11 // pred_check_branch
          %210 = sbr.rel (%p208) target = $region16
        $region15: #{rho_forward.1} parent=11 // pred_region
          %s212 = ssub.s32 1024, 1024
          %213 = vsyncadd [#allocation3], %s212
          %s214 = sshll.u32 [#allocation2], 4
          %s215 = int_to_ptr.vmem [resolvable:$true] %s214
          %220 = dma.hbm_to_vmem [thread:$0]  %s1, 1024, %s215, [#allocation3], 64, 64, 4
        $region16: #{rho_forward.1} parent=11 // pred_fallthru
          _
        // Predicated region
        $region17: #{rho_forward.1} parent=11 // pred_check
          %p221 = pneg %p83
        $region18: #{rho_forward.1} parent=11 // pred_check_branch
          %223 = sbr.rel (%p221) target = $region20
        $region19: #{rho_forward.1} parent=11 // pred_region
          _
        $region20: #{rho_forward.1} parent=11 // pred_fallthru
          _
        // Predicated region
        $region21: #{rho_forward.1} parent=11 // pred_check
          %p224 = pneg %p104
        $region22: #{rho_forward.1} parent=11 // pred_check_branch
          %226 = sbr.rel (%p224) target = $region24
        $region23: #{rho_forward.1} parent=11 // pred_region
          %s228 = ssub.s32 1024, 1024
          %229 = vsyncadd [#allocation5], %s228
          %s230 = sshll.u32 [#allocation4], 4
          %s231 = int_to_ptr.vmem [resolvable:$true] %s230
          %236 = dma.hbm_to_vmem [thread:$0]  %s3, 1024, %s231, [#allocation5], 64, 64, 4
        $region24: #{rho_forward.1} parent=11 // pred_fallthru
          _
        // Predicated region
        $region25: #{rho_forward.1} parent=11 // pred_check
          %p237 = pneg %p125
        $region26: #{rho_forward.1} parent=11 // pred_check_branch
          %239 = sbr.rel (%p237) target = $region28
        $region27: #{rho_forward.1} parent=11 // pred_region
          _
        $region28: #{rho_forward.1} parent=11 // pred_fallthru
          _
        // Predicated region
        $region29: #{rho_forward.1} parent=11 // pred_check
          %p240 = pneg %p146
        $region30: #{rho_forward.1} parent=11 // pred_check_branch
          %242 = sbr.rel (%p240) target = $region32
        $region31: #{rho_forward.1} parent=11 // pred_region
          _
        $region32: #{rho_forward.1} parent=11 // pred_fallthru
          _
        // Predicated region
        $region33: #{rho_forward.1} parent=11 // pred_check
          %p243 = pneg %p167
        $region34: #{rho_forward.1} parent=11 // pred_check_branch
          %245 = sbr.rel (%p243) target = $region36
        $region35: #{rho_forward.1} parent=11 // pred_region
          _
        $region36: #{rho_forward.1} parent=11 // pred_fallthru
          _
      $region12: #{rho_forward.1} parent=5 // pred_fallthru
        _
      %p246 = scmp.lt.s32.totalorder %s15, 2
      // Predicated region
      $region37: #{rho_forward.1} parent=5 // pred_check
        %p247 = pneg %p246
      $region38: #{rho_forward.1} parent=5 // pred_check_branch
        %249 = sbr.rel (%p247) target = $region40
      $region39: #{rho_forward.1} parent=5 // pred_region
        // Predicated region
        $region41: #{rho_forward.1} parent=39 // pred_check
          %p250 = pneg %p35
        $region42: #{rho_forward.1} parent=39 // pred_check_branch
          %252 = sbr.rel (%p250) target = $region44
        $region43: #{rho_forward.1} parent=39 // pred_region
          %p253 = scmp.lt.s32.totalorder %s15, 1
          %s254 = scalar_select %p253, %s15, 1
          %s255 = smul.addr %s254, 8
          %s256 = scalar_lea.vmem %s0, %s255
        $region44: #{rho_forward.1} parent=39 // pred_fallthru
          _
      $region40: #{rho_forward.1} parent=5 // pred_fallthru
        _
      %p257 = scmp.le.s32.totalorder 1, %s15
      %p258 = scmp.lt.s32.totalorder %s15, 3
      %p259 = pnand %p257, %p258
      %p260 = pneg %p259
      // Predicated region
      $region45: #{rho_forward.1} parent=5 // pred_check
        _
      $region46: #{rho_forward.1} parent=5 // pred_check_branch
        %262 = sbr.rel (%p259) target = $region48
      $region47: #{rho_forward.1} parent=5 // pred_region
        %s263 = ssub.s32 %s15, 1
        // Predicated region
        $region49: #{rho_forward.1} parent=47 // pred_check
          %p264 = pneg %p62
        $region50: #{rho_forward.1} parent=47 // pred_check_branch
          %266 = sbr.rel (%p264) target = $region52
        $region51: #{rho_forward.1} parent=47 // pred_region
          %267 = dma.done [#allocation3], 1024
        $region52: #{rho_forward.1} parent=47 // pred_fallthru
          _
        // Predicated region
        $region53: #{rho_forward.1} parent=47 // pred_check
          %p268 = pneg %p104
        $region54: #{rho_forward.1} parent=47 // pred_check_branch
          %270 = sbr.rel (%p268) target = $region56
        $region55: #{rho_forward.1} parent=47 // pred_region
          %271 = dma.done [#allocation5], 1024
        $region56: #{rho_forward.1} parent=47 // pred_fallthru
          _
        %p272 = scmp.lt.s32.totalorder %s20, 1
        %s273 = scalar_select %p272, %s20, 1
        %s274 = smul.addr %s273, 8
        %s275 = scalar_lea.vmem %s0, %s274
        %p276 = pneg %p41
        %p277 = pneg %p38
        %p278 = pneg %p62
        %p279 = pneg %p59
        %p280 = pneg %p83
        %p281 = pneg %p80
        %p282 = pneg %p104
        %p283 = pneg %p101
        %p284 = pneg %p125
        %p285 = pneg %p122
        %p286 = pneg %p146
        %p287 = pneg %p143
        %p288 = pneg %p167
        %p289 = pneg %p164
        %p290 = pneg %p193
        %p291 = pneg %p190
        %p292 = scmp.lt.s32.totalorder %s20, 1
        %s293 = scalar_select %p292, %s20, 1
        %s294 = smul.addr %s293, 8
        %s295 = scalar_lea.vmem %s7, %s294
        %p296 = scmp.lt.s32.totalorder %s20, 1
        %s297 = scalar_select %p296, %s20, 1
        %s298 = smul.addr %s297, 8
        %s299 = scalar_lea.vmem %s0, %s298
        %p300 = scmp.lt.s32.totalorder %s20, 1
        %s301 = scalar_select %p300, %s20, 1
        %s302 = smul.addr %s301, 8
        %s303 = scalar_lea.vmem %s7, %s302
        %v305 = vld [vmem:[%s299] sm:$0xff]
        %v306 = vpack.c.bf16 %v305, %v305
        %v307 = vld [vmem:[#allocation2] sm:$0xf]
        %v308 = vld [vmem:[#allocation2 + $0x4] sm:$0xf]
        %v309 = vld [vmem:[#allocation2 + $0x8] sm:$0xf]
        %v310 = vld [vmem:[#allocation2 + $0xc] sm:$0xf]
        %v311 = vld [vmem:[#allocation2 + $0x10] sm:$0xf]
        %v312 = vld [vmem:[#allocation2 + $0x14] sm:$0xf]
        %v313 = vld [vmem:[#allocation2 + $0x18] sm:$0xf]
        %v314 = vld [vmem:[#allocation2 + $0x1c] sm:$0xf]
        %v315 = vld [vmem:[#allocation2 + $0x20] sm:$0xf]
        %v316 = vld [vmem:[#allocation2 + $0x24] sm:$0xf]
        %v317 = vld [vmem:[#allocation2 + $0x28] sm:$0xf]
        %v318 = vld [vmem:[#allocation2 + $0x2c] sm:$0xf]
        %v319 = vld [vmem:[#allocation2 + $0x30] sm:$0xf]
        %v320 = vld [vmem:[#allocation2 + $0x34] sm:$0xf]
        %v321 = vld [vmem:[#allocation2 + $0x38] sm:$0xf]
        %v322 = vld [vmem:[#allocation2 + $0x3c] sm:$0xf]
        %v323 = vld [vmem:[%s2] sm:$0x1]
        %v325 = vlaneseq
        %v326 = vshrl.u32 %v325, 7
        %v327 = vsub.s32 0, %v326
        %v328 = vrot.slane %v323, %v327
        %v346 = vunpack.c.l.b16 %v307
        %v347 = vunpack.c.l.b16 %v308
        %v348 = vunpack.c.l.b16 %v309
        %v349 = vunpack.c.l.b16 %v310
        %v350 = vunpack.c.l.b16 %v311
        %v351 = vunpack.c.l.b16 %v312
        %v352 = vunpack.c.l.b16 %v313
        %v353 = vunpack.c.l.b16 %v314
        %v354 = vunpack.c.l.b16 %v315
        %v355 = vunpack.c.l.b16 %v316
        %v356 = vunpack.c.l.b16 %v317
        %v357 = vunpack.c.l.b16 %v318
        %v358 = vunpack.c.l.b16 %v319
        %v359 = vunpack.c.l.b16 %v320
        %v360 = vunpack.c.l.b16 %v321
        %v361 = vunpack.c.l.b16 %v322
        %v362 = vpack.c.b16 %v347, %v346
        %v363 = vpack.c.b16 %v349, %v348
        %v364 = vpack.c.b16 %v351, %v350
        %v365 = vpack.c.b16 %v353, %v352
        %v366 = vpack.c.b16 %v355, %v354
        %v367 = vpack.c.b16 %v357, %v356
        %v368 = vpack.c.b16 %v359, %v358
        %v369 = vpack.c.b16 %v361, %v360
        %378 = vmatprep.subr.bf16.mxu0 0
        %379 = vmatpush1.bf16.msra.mxu0 %v362
        %380 = vmatprep.subr.bf16.mxu0 0
        %381 = vmatpush1.bf16.msra.mxu0 %v363
        %382 = vmatprep.subr.bf16.mxu0 0
        %383 = vmatpush1.bf16.msra.mxu0 %v364
        %384 = vmatprep.subr.bf16.mxu0 0
        %385 = vmatpush1.bf16.msra.mxu0 %v365
        %386 = vmatprep.subr.bf16.mxu0 0
        %387 = vmatpush1.bf16.msra.mxu0 %v366
        %388 = vmatprep.subr.bf16.mxu0 0
        %389 = vmatpush1.bf16.msra.mxu0 %v367
        %390 = vmatprep.subr.bf16.mxu0 0
        %391 = vmatpush1.bf16.msra.mxu0 %v368
        %392 = vmatprep.subr.bf16.mxu0 0
        %393 = vmatpush1.bf16.msra.mxu0 %v369
        %394 = vmatprep.subr.bf16.mxu0 0
        %395 = vmatpush1.bf16.msra.mxu0 0
        %396 = vmatprep.subr.bf16.mxu0 0
        %397 = vmatpush1.bf16.msra.mxu0 0
        %398 = vmatprep.subr.bf16.mxu0 0
        %399 = vmatpush1.bf16.msra.mxu0 0
        %400 = vmatprep.subr.bf16.mxu0 0
        %401 = vmatpush1.bf16.msra.mxu0 0
        %402 = vmatprep.subr.bf16.mxu0 0
        %403 = vmatpush1.bf16.msra.mxu0 0
        %404 = vmatprep.subr.bf16.mxu0 0
        %405 = vmatpush1.bf16.msra.mxu0 0
        %406 = vmatprep.subr.bf16.mxu0 0
        %407 = vmatpush1.bf16.msra.mxu0 0
        %408 = vmatprep.subr.bf16.mxu0 0
        %409 = vmatpush1.bf16.msra.mxu0 0
        %410 = vmatprep.mubr.bf16.mxu0 0
        %411 = vmatmul.mubr.bf16.gmra.mrb[0].mxu0 %v306
        %v412 = vpop.f32.mrb[0].mxu0
        %v413 = vadd.f32 %v328, %v412
        %v414 = vpop.f32.mrb[0].mxu0
        %v415 = vpop.f32.mrb[0].mxu0
        %v416 = vpop.f32.mrb[0].mxu0
        %417 = vdwg.mxu0
        %vm418 = vcmp.ge.f32.partialorder %v413, 0.0
        %v419 = vmul.f32 %v413, 0.01
        %v420 = vsel %vm418, %v413, %v419
        %v421 = vpack.c.bf16 %v420, %v420
        %v422 = vld [vmem:[#allocation4] sm:$0xf]
        %v423 = vld [vmem:[#allocation4 + $0x4] sm:$0xf]
        %v424 = vld [vmem:[#allocation4 + $0x8] sm:$0xf]
        %v425 = vld [vmem:[#allocation4 + $0xc] sm:$0xf]
        %v426 = vld [vmem:[#allocation4 + $0x10] sm:$0xf]
        %v427 = vld [vmem:[#allocation4 + $0x14] sm:$0xf]
        %v428 = vld [vmem:[#allocation4 + $0x18] sm:$0xf]
        %v429 = vld [vmem:[#allocation4 + $0x1c] sm:$0xf]
        %v430 = vld [vmem:[#allocation4 + $0x20] sm:$0xf]
        %v431 = vld [vmem:[#allocation4 + $0x24] sm:$0xf]
        %v432 = vld [vmem:[#allocation4 + $0x28] sm:$0xf]
        %v433 = vld [vmem:[#allocation4 + $0x2c] sm:$0xf]
        %v434 = vld [vmem:[#allocation4 + $0x30] sm:$0xf]
        %v435 = vld [vmem:[#allocation4 + $0x34] sm:$0xf]
        %v436 = vld [vmem:[#allocation4 + $0x38] sm:$0xf]
        %v437 = vld [vmem:[#allocation4 + $0x3c] sm:$0xf]
        %v438 = vld [vmem:[%s4] sm:$0x1]
        %v440 = vlaneseq
        %v441 = vshrl.u32 %v440, 7
        %v442 = vsub.s32 0, %v441
        %v443 = vrot.slane %v438, %v442
        %v461 = vunpack.c.l.b16 %v422
        %v462 = vunpack.c.l.b16 %v423
        %v463 = vunpack.c.l.b16 %v424
        %v464 = vunpack.c.l.b16 %v425
        %v465 = vunpack.c.l.b16 %v426
        %v466 = vunpack.c.l.b16 %v427
        %v467 = vunpack.c.l.b16 %v428
        %v468 = vunpack.c.l.b16 %v429
        %v469 = vunpack.c.l.b16 %v430
        %v470 = vunpack.c.l.b16 %v431
        %v471 = vunpack.c.l.b16 %v432
        %v472 = vunpack.c.l.b16 %v433
        %v473 = vunpack.c.l.b16 %v434
        %v474 = vunpack.c.l.b16 %v435
        %v475 = vunpack.c.l.b16 %v436
        %v476 = vunpack.c.l.b16 %v437
        %v477 = vpack.c.b16 %v462, %v461
        %v478 = vpack.c.b16 %v464, %v463
        %v479 = vpack.c.b16 %v466, %v465
        %v480 = vpack.c.b16 %v468, %v467
        %v481 = vpack.c.b16 %v470, %v469
        %v482 = vpack.c.b16 %v472, %v471
        %v483 = vpack.c.b16 %v474, %v473
        %v484 = vpack.c.b16 %v476, %v475
        %493 = vmatprep.subr.bf16.mxu0 0
        %494 = vmatpush1.bf16.msra.mxu0 %v477
        %495 = vmatprep.subr.bf16.mxu0 0
        %496 = vmatpush1.bf16.msra.mxu0 %v478
        %497 = vmatprep.subr.bf16.mxu0 0
        %498 = vmatpush1.bf16.msra.mxu0 %v479
        %499 = vmatprep.subr.bf16.mxu0 0
        %500 = vmatpush1.bf16.msra.mxu0 %v480
        %501 = vmatprep.subr.bf16.mxu0 0
        %502 = vmatpush1.bf16.msra.mxu0 %v481
        %503 = vmatprep.subr.bf16.mxu0 0
        %504 = vmatpush1.bf16.msra.mxu0 %v482
        %505 = vmatprep.subr.bf16.mxu0 0
        %506 = vmatpush1.bf16.msra.mxu0 %v483
        %507 = vmatprep.subr.bf16.mxu0 0
        %508 = vmatpush1.bf16.msra.mxu0 %v484
        %509 = vmatprep.subr.bf16.mxu0 0
        %510 = vmatpush1.bf16.msra.mxu0 0
        %511 = vmatprep.subr.bf16.mxu0 0
        %512 = vmatpush1.bf16.msra.mxu0 0
        %513 = vmatprep.subr.bf16.mxu0 0
        %514 = vmatpush1.bf16.msra.mxu0 0
        %515 = vmatprep.subr.bf16.mxu0 0
        %516 = vmatpush1.bf16.msra.mxu0 0
        %517 = vmatprep.subr.bf16.mxu0 0
        %518 = vmatpush1.bf16.msra.mxu0 0
        %519 = vmatprep.subr.bf16.mxu0 0
        %520 = vmatpush1.bf16.msra.mxu0 0
        %521 = vmatprep.subr.bf16.mxu0 0
        %522 = vmatpush1.bf16.msra.mxu0 0
        %523 = vmatprep.subr.bf16.mxu0 0
        %524 = vmatpush1.bf16.msra.mxu0 0
        %525 = vmatprep.mubr.bf16.mxu0 0
        %526 = vmatmul.mubr.bf16.gmra.mrb[0].mxu0 %v421
        %v527 = vpop.f32.mrb[0].mxu0
        %v528 = vadd.f32 %v443, %v527
        %v529 = vpop.f32.mrb[0].mxu0
        %v530 = vpop.f32.mrb[0].mxu0
        %v531 = vpop.f32.mrb[0].mxu0
        %532 = vdwg.mxu0
        %vm533 = vcmp.ge.f32.partialorder %v528, 0.0
        %v534 = vmul.f32 %v528, 0.01
        %v535 = vsel %vm533, %v528, %v534
        %v536 = vpack.c.bf16 %v535, %v535
        %v537 = vld [vmem:[%s5] sm:$0xf]
        %v538 = vld [vmem:[%s5 + $0x4] sm:$0xf]
        %v539 = vld [vmem:[%s5 + $0x8] sm:$0xf]
        %v540 = vld [vmem:[%s5 + $0xc] sm:$0xf]
        %v541 = vld [vmem:[%s5 + $0x10] sm:$0xf]
        %v542 = vld [vmem:[%s5 + $0x14] sm:$0xf]
        %v543 = vld [vmem:[%s5 + $0x18] sm:$0xf]
        %v544 = vld [vmem:[%s5 + $0x1c] sm:$0xf]
        %v545 = vld [vmem:[%s5 + $0x20] sm:$0xf]
        %v546 = vld [vmem:[%s5 + $0x24] sm:$0xf]
        %v547 = vld [vmem:[%s5 + $0x28] sm:$0xf]
        %v548 = vld [vmem:[%s5 + $0x2c] sm:$0xf]
        %v549 = vld [vmem:[%s5 + $0x30] sm:$0xf]
        %v550 = vld [vmem:[%s5 + $0x34] sm:$0xf]
        %v551 = vld [vmem:[%s5 + $0x38] sm:$0xf]
        %v552 = vld [vmem:[%s5 + $0x3c] sm:$0xf]
        %v553 = vld [vmem:[%s6] sm:$0x1]
        %v555 = vlaneseq
        %v556 = vshrl.u32 %v555, 7
        %v557 = vsub.s32 0, %v556
        %v558 = vrot.slane %v553, %v557
        %v576 = vunpack.c.l.b16 %v537
        %v577 = vunpack.c.l.b16 %v538
        %v578 = vunpack.c.l.b16 %v539
        %v579 = vunpack.c.l.b16 %v540
        %v580 = vunpack.c.l.b16 %v541
        %v581 = vunpack.c.l.b16 %v542
        %v582 = vunpack.c.l.b16 %v543
        %v583 = vunpack.c.l.b16 %v544
        %v584 = vunpack.c.l.b16 %v545
        %v585 = vunpack.c.l.b16 %v546
        %v586 = vunpack.c.l.b16 %v547
        %v587 = vunpack.c.l.b16 %v548
        %v588 = vunpack.c.l.b16 %v549
        %v589 = vunpack.c.l.b16 %v550
        %v590 = vunpack.c.l.b16 %v551
        %v591 = vunpack.c.l.b16 %v552
        %v592 = vpack.c.b16 %v577, %v576
        %v593 = vpack.c.b16 %v579, %v578
        %v594 = vpack.c.b16 %v581, %v580
        %v595 = vpack.c.b16 %v583, %v582
        %v596 = vpack.c.b16 %v585, %v584
        %v597 = vpack.c.b16 %v587, %v586
        %v598 = vpack.c.b16 %v589, %v588
        %v599 = vpack.c.b16 %v591, %v590
        %608 = vmatprep.subr.bf16.mxu0 0
        %609 = vmatpush1.bf16.msra.mxu0 %v592
        %610 = vmatprep.subr.bf16.mxu0 0
        %611 = vmatpush1.bf16.msra.mxu0 %v593
        %612 = vmatprep.subr.bf16.mxu0 0
        %613 = vmatpush1.bf16.msra.mxu0 %v594
        %614 = vmatprep.subr.bf16.mxu0 0
        %615 = vmatpush1.bf16.msra.mxu0 %v595
        %616 = vmatprep.subr.bf16.mxu0 0
        %617 = vmatpush1.bf16.msra.mxu0 %v596
        %618 = vmatprep.subr.bf16.mxu0 0
        %619 = vmatpush1.bf16.msra.mxu0 %v597
        %620 = vmatprep.subr.bf16.mxu0 0
        %621 = vmatpush1.bf16.msra.mxu0 %v598
        %622 = vmatprep.subr.bf16.mxu0 0
        %623 = vmatpush1.bf16.msra.mxu0 %v599
        %624 = vmatprep.subr.bf16.mxu0 0
        %625 = vmatpush1.bf16.msra.mxu0 0
        %626 = vmatprep.subr.bf16.mxu0 0
        %627 = vmatpush1.bf16.msra.mxu0 0
        %628 = vmatprep.subr.bf16.mxu0 0
        %629 = vmatpush1.bf16.msra.mxu0 0
        %630 = vmatprep.subr.bf16.mxu0 0
        %631 = vmatpush1.bf16.msra.mxu0 0
        %632 = vmatprep.subr.bf16.mxu0 0
        %633 = vmatpush1.bf16.msra.mxu0 0
        %634 = vmatprep.subr.bf16.mxu0 0
        %635 = vmatpush1.bf16.msra.mxu0 0
        %636 = vmatprep.subr.bf16.mxu0 0
        %637 = vmatpush1.bf16.msra.mxu0 0
        %638 = vmatprep.subr.bf16.mxu0 0
        %639 = vmatpush1.bf16.msra.mxu0 0
        %640 = vmatprep.mubr.bf16.mxu0 0
        %641 = vmatmul.mubr.bf16.gmra.mrb[0].mxu0 %v536
        %v642 = vpop.f32.mrb[0].mxu0
        %v643 = vadd.f32 %v558, %v642
        %v644 = vpop.f32.mrb[0].mxu0
        %v645 = vpop.f32.mrb[0].mxu0
        %v646 = vpop.f32.mrb[0].mxu0
        %647 = vdwg.mxu0
        %vm648 = vcmask 7168
        %649 = vst.msk [vmem:[%s303] sm:$0xff] %vm648, %v643
        %p650 = scmp.lt.s32.totalorder %s20, 1
        %s651 = scalar_select %p650, %s20, 1
        %s652 = smul.addr %s651, 8
        %s653 = scalar_lea.vmem %s7, %s652
        // Predicated region
        $region57: #{rho_forward.1} parent=47 // pred_check
          %p654 = pneg %p190
        $region58: #{rho_forward.1} parent=47 // pred_check_branch
          %656 = sbr.rel (%p654) target = $region60
        $region59: #{rho_forward.1} parent=47 // pred_region
          _
        $region60: #{rho_forward.1} parent=47 // pred_fallthru
          _
      $region48: #{rho_forward.1} parent=5 // pred_fallthru
        _
      %p657 = scmp.le.s32.totalorder 2, %s15
      // Predicated region
      $region61: #{rho_forward.1} parent=5 // pred_check
        %p658 = pneg %p657
      $region62: #{rho_forward.1} parent=5 // pred_check_branch
        %660 = sbr.rel (%p658) target = $region64
      $region63: #{rho_forward.1} parent=5 // pred_region
        %s661 = ssub.s32 %s15, 2
        // Predicated region
        $region65: #{rho_forward.1} parent=63 // pred_check
          %p662 = pneg %p196
        $region66: #{rho_forward.1} parent=63 // pred_check_branch
          %664 = sbr.rel (%p662) target = $region68
        $region67: #{rho_forward.1} parent=63 // pred_region
          %p665 = scmp.lt.s32.totalorder %s21, 1
          %s666 = scalar_select %p665, %s21, 1
          %s667 = smul.addr %s666, 8
          %s668 = scalar_lea.vmem %s7, %s667
        $region68: #{rho_forward.1} parent=63 // pred_fallthru
          _
      $region64: #{rho_forward.1} parent=5 // pred_fallthru
        _
    $region6: #{rho_forward.1} parent=1 // loop_footer
      %s19 = sadd.s32 1, %s15
    $region7: #{rho_forward.1} parent=1 // loop_footer_branch
      %14 = sbr.rel target = $region3
    $region8: #{rho_forward.1} parent=1 // loop_exit
      _
    %669 = vsyncpa [#allocation3], 1
    %s670 = scalar_lea.sflag [#allocation3], 1
    %671 = vsyncpa %s670, 1
    %672 = vsyncpa [#allocation5], 1

</llo_original>
